<compile_context>
chip_gen: v7x
topology: tpu7x:2x2x1
jax: 0.10.0
libtpu: 0.0.40
codegen_flags: <defaults>
</compile_context>

<pallas_src>
import functools

import jax
import jax.numpy as jnp
from jax.experimental import pallas as pl
from jax.experimental.pallas import tpu as pltpu


def _block_kernel(T, n_head, head_size,
                  x_ref,
                  ln1_g_ref, ln1_b_ref,
                  wqkv_ref, wproj_ref, bproj_ref,
                  ln2_g_ref, ln2_b_ref,
                  w1_ref, b1_ref, w2_ref, b2_ref,
                  o_ref):
    C = n_head * head_size
    eps = 1e-5

    # One batch element per grid step: (1, T, C) -> (T, C).
    x = x_ref[...].reshape(T, C)                               # f32

    # ---- LayerNorm 1 (f32 elementwise) ----
    mean = jnp.mean(x, axis=-1, keepdims=True)
    var = jnp.mean((x - mean) ** 2, axis=-1, keepdims=True)
    xn = (x - mean) * jax.lax.rsqrt(var + eps) * ln1_g_ref[...] + ln1_b_ref[...]
    xn_bf = xn.astype(jnp.bfloat16)

    # ---- Fused QKV: one MXU pass, 3C output lanes ----
    # Q columns of wqkv are pre-scaled by head_size**-0.5 at param-prep time.
    qkv = jnp.dot(xn_bf, wqkv_ref[...], preferred_element_type=jnp.float32)   # (T, 3C)
    qkv_bf = qkv.astype(jnp.bfloat16)                          # cast once

    # Causal mask (T x T), built once per step.
    row = jax.lax.broadcasted_iota(jnp.int32, (T, T), 0)
    col = jax.lax.broadcasted_iota(jnp.int32, (T, T), 1)
    causal = row >= col

    # ---- Multi-head causal self-attention ----
    head_outs = []
    for h in range(n_head):                                    # static unroll (n_head=4)
        s0 = h * head_size
        q_h = qkv_bf[:, s0:s0 + head_size]                     # (T, hs) bf16
        k_h = qkv_bf[:, C + s0:C + s0 + head_size]
        v_h = qkv_bf[:, 2 * C + s0:2 * C + s0 + head_size]

        # Scores: contract over head dim — no explicit transpose materialized.
        s = jax.lax.dot_general(q_h, k_h, (((1,), (1,)), ((), ())),
                                preferred_element_type=jnp.float32)            # (T, T)
        s = jnp.where(causal, s, -jnp.inf)
        m = jnp.max(s, axis=-1, keepdims=True)
        p = jnp.exp(s - m)                                     # f32 softmax
        p = p * pl.reciprocal(jnp.sum(p, axis=-1, keepdims=True), approx=True)
        head_outs.append(jnp.dot(p.astype(jnp.bfloat16), v_h,
                                 preferred_element_type=jnp.float32))          # (T, hs)

    # Lane-concatenate head outputs, single full-width output projection.
    oh = jnp.concatenate(head_outs, axis=-1).astype(jnp.bfloat16)              # (T, C)
    sa = jnp.dot(oh, wproj_ref[...], preferred_element_type=jnp.float32) + bproj_ref[...]

    # ---- Residual 1 ----
    x1 = x + sa

    # ---- LayerNorm 2 (f32 elementwise) ----
    mean2 = jnp.mean(x1, axis=-1, keepdims=True)
    var2 = jnp.mean((x1 - mean2) ** 2, axis=-1, keepdims=True)
    x2n = (x1 - mean2) * jax.lax.rsqrt(var2 + eps) * ln2_g_ref[...] + ln2_b_ref[...]

    # ---- FeedForward: Linear -> ReLU -> Linear (bf16 matmuls, f32 acc) ----
    h1 = jnp.dot(x2n.astype(jnp.bfloat16), w1_ref[...],
                 preferred_element_type=jnp.float32) + b1_ref[...]
    h1 = jnp.maximum(h1, 0.0)
    ff = jnp.dot(h1.astype(jnp.bfloat16), w2_ref[...],
                 preferred_element_type=jnp.float32) + b2_ref[...]

    # ---- Residual 2 ----
    o_ref[...] = (x1 + ff).reshape(1, T, C)


def prepare_params(params, *, head_size):
    """One-time parameter preparation (NOT per call): bf16 weight casts,
    QKV fusion, and folding the attention scale into the Q columns."""
    (ln1_g, ln1_b, wq, wk, wv, wproj, bproj,
     ln2_g, ln2_b, w1, b1, w2, b2) = params
    scale = float(head_size) ** -0.5
    wqkv = jnp.concatenate([wq * scale, wk, wv], axis=1).astype(jnp.bfloat16)  # (C, 3C)
    return (ln1_g, ln1_b,
            wqkv,
            wproj.astype(jnp.bfloat16), bproj,
            ln2_g, ln2_b,
            w1.astype(jnp.bfloat16), b1,
            w2.astype(jnp.bfloat16), b2)


def transformer_block(x, prepared_params, *, n_head, head_size):
    B, T, C = x.shape
    H = 4 * C
    (ln1_g, ln1_b, wqkv, wproj, bproj,
     ln2_g, ln2_b, w1, b1, w2, b2) = prepared_params

    # Weights: full blocks with constant index_maps -> VMEM-resident across
    # the (parallel) batch grid, no re-DMA per step.
    full2d = lambda shape: pl.BlockSpec(shape, lambda b: (0, 0))

    kernel = functools.partial(_block_kernel, T, n_head, head_size)
    return pl.pallas_call(
        kernel,
        out_shape=jax.ShapeDtypeStruct((B, T, C), jnp.float32),
        grid=(B,),
        in_specs=[
            pl.BlockSpec((1, T, C), lambda b: (b, 0, 0)),   # x (one batch row / step)
            full2d((1, C)), full2d((1, C)),                 # ln1 gamma, beta
            full2d((C, 3 * C)),                             # fused Wqkv (Q pre-scaled)
            full2d((C, C)), full2d((1, C)),                 # Wproj, bproj
            full2d((1, C)), full2d((1, C)),                 # ln2 gamma, beta
            full2d((C, H)), full2d((1, H)),                 # FFN W1, b1
            full2d((H, C)), full2d((1, C)),                 # FFN W2, b2
        ],
        out_specs=pl.BlockSpec((1, T, C), lambda b: (b, 0, 0)),
        compiler_params=pltpu.CompilerParams(
            dimension_semantics=("parallel",),              # v7x: both TCs get work
            vmem_limit_bytes=32 * 1024 * 1024),
    )(x, ln1_g, ln1_b, wqkv, wproj, bproj, ln2_g, ln2_b, w1, b1, w2, b2)


def reference_block(x, params, *, n_head, head_size):
    """Pure-JAX f32 reference for verification (takes the RAW params)."""
    (ln1_g, ln1_b, wq, wk, wv, wproj, bproj,
     ln2_g, ln2_b, w1, b1, w2, b2) = params
    eps = 1e-5

    def ln(z, g, b):
        m = jnp.mean(z, axis=-1, keepdims=True)
        v = jnp.mean((z - m) ** 2, axis=-1, keepdims=True)
        return (z - m) * jax.lax.rsqrt(v + eps) * g[0] + b[0]

    B, T, C = x.shape
    xn = ln(x, ln1_g, ln1_b)
    q = xn @ wq
    k = xn @ wk
    v = xn @ wv
    causal = jnp.tril(jnp.ones((T, T), bool))
    outs = []
    for h in range(n_head):
        s0 = h * head_size
        qh, kh, vh = (a[..., s0:s0 + head_size] for a in (q, k, v))
        sc = jnp.einsum('btd,bsd->bts', qh, kh) * (head_size ** -0.5)
        sc = jnp.where(causal, sc, -jnp.inf)
        p = jax.nn.softmax(sc, axis=-1)
        outs.append(jnp.einsum('bts,bsd->btd', p, vh))
    sa = jnp.concatenate(outs, axis=-1) @ wproj + bproj[0]
    x1 = x + sa
    x2n = ln(x1, ln2_g, ln2_b)
    ff = jnp.maximum(x2n @ w1 + b1[0], 0.0) @ w2 + b2[0]
    return x1 + ff


if __name__ == "__main__":
    # Small shapes implied by the module: batch=2, seq(block_size)=8, n_embd=32, n_head=4
    B, T, C = 2, 8, 32
    n_head = 4
    head_size = C // n_head
    H = 4 * C

    key = jax.random.PRNGKey(0)
    ks = jax.random.split(key, 10)
    scale = 0.02

    # Weights stored in "x @ W" orientation (PyTorch Linear weight transposed).
    ln1_g = jnp.ones((1, C), jnp.float32)
    ln1_b = jnp.zeros((1, C), jnp.float32)
    wq = scale * jax.random.normal(ks[0], (C, C), jnp.float32)   # columns grouped per head
    wk = scale * jax.random.normal(ks[1], (C, C), jnp.float32)
    wv = scale * jax.random.normal(ks[2], (C, C), jnp.float32)
    wproj = scale * jax.random.normal(ks[3], (C, C), jnp.float32)
    bproj = scale * jax.random.normal(ks[4], (1, C), jnp.float32)
    ln2_g = jnp.ones((1, C), jnp.float32)
    ln2_b = jnp.zeros((1, C), jnp.float32)
    w1 = scale * jax.random.normal(ks[5], (C, H), jnp.float32)
    b1 = scale * jax.random.normal(ks[6], (1, H), jnp.float32)
    w2 = scale * jax.random.normal(ks[7], (H, C), jnp.float32)
    b2 = scale * jax.random.normal(ks[8], (1, C), jnp.float32)

    params = (ln1_g, ln1_b, wq, wk, wv, wproj, bproj,
              ln2_g, ln2_b, w1, b1, w2, b2)

    # One-time prep (bf16 cast, QKV fusion, Q-scale folding) — not per call.
    prepared = prepare_params(params, head_size=head_size)

    x = jax.random.normal(ks[9], (B, T, C), jnp.float32)

    out = transformer_block(x, prepared, n_head=n_head, head_size=head_size)
    out = jax.block_until_ready(out)

    ref = reference_block(x, params, n_head=n_head, head_size=head_size)
    # bf16 matmul operands (f32 accumulation) -> loosened tolerance vs f32 reference.
    assert jnp.allclose(out, ref, atol=2e-2, rtol=2e-2), "mismatch vs reference"

    print("KERNEL_OK")
</pallas_src>

<mosaic_0001>
module attributes {stable_mosaic.version = 11 : i64} {
  func.func @_block_kernel(%arg0: i32, %arg1: memref<1x8x32xf32, #tpu.memory_space<vmem>>, %arg2: memref<1x32xf32, #tpu.memory_space<vmem>>, %arg3: memref<1x32xf32, #tpu.memory_space<vmem>>, %arg4: memref<32x96xbf16, #tpu.memory_space<vmem>>, %arg5: memref<32x32xbf16, #tpu.memory_space<vmem>>, %arg6: memref<1x32xf32, #tpu.memory_space<vmem>>, %arg7: memref<1x32xf32, #tpu.memory_space<vmem>>, %arg8: memref<1x32xf32, #tpu.memory_space<vmem>>, %arg9: memref<32x128xbf16, #tpu.memory_space<vmem>>, %arg10: memref<1x128xf32, #tpu.memory_space<vmem>>, %arg11: memref<128x32xbf16, #tpu.memory_space<vmem>>, %arg12: memref<1x32xf32, #tpu.memory_space<vmem>>, %arg13: memref<1x8x32xf32, #tpu.memory_space<vmem>>) attributes {dimension_semantics = [#tpu.dimension_semantics<parallel>], iteration_bounds = array<i64: 2>, scalar_prefetch = 0 : i64, scratch_operands = 0 : i64, tpu.core_type = #tpu.core_type<tc>, window_params = [{transform_indices = @transform_0, window_bounds = array<i64: 1, 8, 32>}, {pipeline_mode = #tpu.pipeline_mode<synchronous>, transform_indices = @transform_1, window_bounds = array<i64: 1, 32>}, {pipeline_mode = #tpu.pipeline_mode<synchronous>, transform_indices = @transform_2, window_bounds = array<i64: 1, 32>}, {pipeline_mode = #tpu.pipeline_mode<synchronous>, transform_indices = @transform_3, window_bounds = array<i64: 32, 96>}, {pipeline_mode = #tpu.pipeline_mode<synchronous>, transform_indices = @transform_4, window_bounds = array<i64: 32, 32>}, {pipeline_mode = #tpu.pipeline_mode<synchronous>, transform_indices = @transform_5, window_bounds = array<i64: 1, 32>}, {pipeline_mode = #tpu.pipeline_mode<synchronous>, transform_indices = @transform_6, window_bounds = array<i64: 1, 32>}, {pipeline_mode = #tpu.pipeline_mode<synchronous>, transform_indices = @transform_7, window_bounds = array<i64: 1, 32>}, {pipeline_mode = #tpu.pipeline_mode<synchronous>, transform_indices = @transform_8, window_bounds = array<i64: 32, 128>}, {pipeline_mode = #tpu.pipeline_mode<synchronous>, transform_indices = @transform_9, window_bounds = array<i64: 1, 128>}, {pipeline_mode = #tpu.pipeline_mode<synchronous>, transform_indices = @transform_10, window_bounds = array<i64: 128, 32>}, {pipeline_mode = #tpu.pipeline_mode<synchronous>, transform_indices = @transform_11, window_bounds = array<i64: 1, 32>}, {transform_indices = @transform_12, window_bounds = array<i64: 1, 8, 32>}]} {
    %c0 = arith.constant 0 : index
    %c0_0 = arith.constant 0 : index
    %c0_1 = arith.constant 0 : index
    %0 = vector.load %arg1[%c0, %c0_0, %c0_1] : memref<1x8x32xf32, #tpu.memory_space<vmem>>, vector<1x8x32xf32>
    %1 = vector.shape_cast %0 : vector<1x8x32xf32> to vector<8x32xf32>
    %cst = arith.constant dense<0.000000e+00> : vector<8xf32>
    %2 = vector.multi_reduction <add>, %1, %cst [1] : vector<8x32xf32> to vector<8xf32>
    %3 = vector.shape_cast %2 : vector<8xf32> to vector<8x1xf32>
    %cst_2 = arith.constant 3.200000e+01 : f32
    %4 = vector.broadcast %cst_2 : f32 to vector<8x1xf32>
    %5 = arith.divf %3, %4 : vector<8x1xf32>
    %6 = vector.broadcast %5 : vector<8x1xf32> to vector<8x32xf32>
    %7 = arith.subf %1, %6 : vector<8x32xf32>
    %8 = arith.mulf %7, %7 : vector<8x32xf32>
    %cst_3 = arith.constant dense<0.000000e+00> : vector<8xf32>
    %9 = vector.multi_reduction <add>, %8, %cst_3 [1] : vector<8x32xf32> to vector<8xf32>
    %10 = vector.shape_cast %9 : vector<8xf32> to vector<8x1xf32>
    %cst_4 = arith.constant 3.200000e+01 : f32
    %11 = vector.broadcast %cst_4 : f32 to vector<8x1xf32>
    %12 = arith.divf %10, %11 : vector<8x1xf32>
    %13 = vector.broadcast %5 : vector<8x1xf32> to vector<8x32xf32>
    %14 = arith.subf %1, %13 : vector<8x32xf32>
    %cst_5 = arith.constant 9.99999974E-6 : f32
    %15 = vector.broadcast %cst_5 : f32 to vector<8x1xf32>
    %16 = arith.addf %12, %15 : vector<8x1xf32>
    %17 = math.rsqrt %16 : vector<8x1xf32>
    %18 = vector.broadcast %17 : vector<8x1xf32> to vector<8x32xf32>
    %19 = arith.mulf %14, %18 : vector<8x32xf32>
    %c0_6 = arith.constant 0 : index
    %c0_7 = arith.constant 0 : index
    %20 = vector.load %arg2[%c0_6, %c0_7] : memref<1x32xf32, #tpu.memory_space<vmem>>, vector<1x32xf32>
    %21 = vector.broadcast %20 : vector<1x32xf32> to vector<8x32xf32>
    %22 = arith.mulf %19, %21 : vector<8x32xf32>
    %c0_8 = arith.constant 0 : index
    %c0_9 = arith.constant 0 : index
    %23 = vector.load %arg3[%c0_8, %c0_9] : memref<1x32xf32, #tpu.memory_space<vmem>>, vector<1x32xf32>
    %24 = vector.broadcast %23 : vector<1x32xf32> to vector<8x32xf32>
    %25 = arith.addf %22, %24 : vector<8x32xf32>
    %26 = arith.truncf %25 : vector<8x32xf32> to vector<8x32xbf16>
    %c0_10 = arith.constant 0 : index
    %c0_11 = arith.constant 0 : index
    %27 = vector.load %arg4[%c0_10, %c0_11] : memref<32x96xbf16, #tpu.memory_space<vmem>>, vector<32x96xbf16>
    %cst_12 = arith.constant dense<0.000000e+00> : vector<8x96xf32>
    %28 = tpu.matmul %26, %27, %cst_12 {dimension_numbers = #tpu.dot_dimension_numbers<[1], [0], [0], [1], [0, 0, 1, 1], [], []>} : vector<8x32xbf16>, vector<32x96xbf16>, vector<8x96xf32> -> vector<8x96xf32>
    %29 = arith.truncf %28 : vector<8x96xf32> to vector<8x96xbf16>
    %30 = tpu.iota {dimensions = array<i32: 0>} : vector<8x8xi32>
    %31 = tpu.iota {dimensions = array<i32: 1>} : vector<8x8xi32>
    %32 = arith.cmpi sge, %30, %31 : vector<8x8xi32>
    %33 = vector.extract_strided_slice %29 {offsets = [0, 0], sizes = [8, 8], strides = [1, 1]} : vector<8x96xbf16> to vector<8x8xbf16>
    %34 = vector.extract_strided_slice %29 {offsets = [0, 32], sizes = [8, 8], strides = [1, 1]} : vector<8x96xbf16> to vector<8x8xbf16>
    %35 = vector.extract_strided_slice %29 {offsets = [0, 64], sizes = [8, 8], strides = [1, 1]} : vector<8x96xbf16> to vector<8x8xbf16>
    %cst_13 = arith.constant dense<0.000000e+00> : vector<8x8xf32>
    %36 = tpu.matmul %33, %34, %cst_13 {dimension_numbers = #tpu.dot_dimension_numbers<[1], [1], [0], [0], [0, 0, 1, 0], [], []>} : vector<8x8xbf16>, vector<8x8xbf16>, vector<8x8xf32> -> vector<8x8xf32>
    %cst_14 = arith.constant 0xFF800000 : f32
    %37 = vector.broadcast %cst_14 : f32 to vector<8x8xf32>
    %38 = arith.select %32, %36, %37 : vector<8x8xi1>, vector<8x8xf32>
    %cst_15 = arith.constant dense<0xFF800000> : vector<8xf32>
    %39 = vector.multi_reduction <maximumf>, %38, %cst_15 [1] : vector<8x8xf32> to vector<8xf32>
    %40 = vector.shape_cast %39 : vector<8xf32> to vector<8x1xf32>
    %41 = vector.broadcast %40 : vector<8x1xf32> to vector<8x8xf32>
    %42 = arith.subf %38, %41 : vector<8x8xf32>
    %43 = math.exp %42 : vector<8x8xf32>
    %cst_16 = arith.constant dense<0.000000e+00> : vector<8xf32>
    %44 = vector.multi_reduction <add>, %43, %cst_16 [1] : vector<8x8xf32> to vector<8xf32>
    %45 = vector.shape_cast %44 : vector<8xf32> to vector<8x1xf32>
    %46 = tpu.reciprocal %45 {approx = true} : vector<8x1xf32> -> vector<8x1xf32>
    %47 = vector.broadcast %46 : vector<8x1xf32> to vector<8x8xf32>
    %48 = arith.mulf %43, %47 : vector<8x8xf32>
    %49 = arith.truncf %48 : vector<8x8xf32> to vector<8x8xbf16>
    %cst_17 = arith.constant dense<0.000000e+00> : vector<8x8xf32>
    %50 = tpu.matmul %49, %35, %cst_17 {dimension_numbers = #tpu.dot_dimension_numbers<[1], [0], [0], [1], [0, 0, 1, 1], [], []>} : vector<8x8xbf16>, vector<8x8xbf16>, vector<8x8xf32> -> vector<8x8xf32>
    %51 = vector.extract_strided_slice %29 {offsets = [0, 8], sizes = [8, 8], strides = [1, 1]} : vector<8x96xbf16> to vector<8x8xbf16>
    %52 = vector.extract_strided_slice %29 {offsets = [0, 40], sizes = [8, 8], strides = [1, 1]} : vector<8x96xbf16> to vector<8x8xbf16>
    %53 = vector.extract_strided_slice %29 {offsets = [0, 72], sizes = [8, 8], strides = [1, 1]} : vector<8x96xbf16> to vector<8x8xbf16>
    %cst_18 = arith.constant dense<0.000000e+00> : vector<8x8xf32>
    %54 = tpu.matmul %51, %52, %cst_18 {dimension_numbers = #tpu.dot_dimension_numbers<[1], [1], [0], [0], [0, 0, 1, 0], [], []>} : vector<8x8xbf16>, vector<8x8xbf16>, vector<8x8xf32> -> vector<8x8xf32>
    %cst_19 = arith.constant 0xFF800000 : f32
    %55 = vector.broadcast %cst_19 : f32 to vector<8x8xf32>
    %56 = arith.select %32, %54, %55 : vector<8x8xi1>, vector<8x8xf32>
    %cst_20 = arith.constant dense<0xFF800000> : vector<8xf32>
    %57 = vector.multi_reduction <maximumf>, %56, %cst_20 [1] : vector<8x8xf32> to vector<8xf32>
    %58 = vector.shape_cast %57 : vector<8xf32> to vector<8x1xf32>
    %59 = vector.broadcast %58 : vector<8x1xf32> to vector<8x8xf32>
    %60 = arith.subf %56, %59 : vector<8x8xf32>
    %61 = math.exp %60 : vector<8x8xf32>
    %cst_21 = arith.constant dense<0.000000e+00> : vector<8xf32>
    %62 = vector.multi_reduction <add>, %61, %cst_21 [1] : vector<8x8xf32> to vector<8xf32>
    %63 = vector.shape_cast %62 : vector<8xf32> to vector<8x1xf32>
    %64 = tpu.reciprocal %63 {approx = true} : vector<8x1xf32> -> vector<8x1xf32>
    %65 = vector.broadcast %64 : vector<8x1xf32> to vector<8x8xf32>
    %66 = arith.mulf %61, %65 : vector<8x8xf32>
    %67 = arith.truncf %66 : vector<8x8xf32> to vector<8x8xbf16>
    %cst_22 = arith.constant dense<0.000000e+00> : vector<8x8xf32>
    %68 = tpu.matmul %67, %53, %cst_22 {dimension_numbers = #tpu.dot_dimension_numbers<[1], [0], [0], [1], [0, 0, 1, 1], [], []>} : vector<8x8xbf16>, vector<8x8xbf16>, vector<8x8xf32> -> vector<8x8xf32>
    %69 = vector.extract_strided_slice %29 {offsets = [0, 16], sizes = [8, 8], strides = [1, 1]} : vector<8x96xbf16> to vector<8x8xbf16>
    %70 = vector.extract_strided_slice %29 {offsets = [0, 48], sizes = [8, 8], strides = [1, 1]} : vector<8x96xbf16> to vector<8x8xbf16>
    %71 = vector.extract_strided_slice %29 {offsets = [0, 80], sizes = [8, 8], strides = [1, 1]} : vector<8x96xbf16> to vector<8x8xbf16>
    %cst_23 = arith.constant dense<0.000000e+00> : vector<8x8xf32>
    %72 = tpu.matmul %69, %70, %cst_23 {dimension_numbers = #tpu.dot_dimension_numbers<[1], [1], [0], [0], [0, 0, 1, 0], [], []>} : vector<8x8xbf16>, vector<8x8xbf16>, vector<8x8xf32> -> vector<8x8xf32>
    %cst_24 = arith.constant 0xFF800000 : f32
    %73 = vector.broadcast %cst_24 : f32 to vector<8x8xf32>
    %74 = arith.select %32, %72, %73 : vector<8x8xi1>, vector<8x8xf32>
    %cst_25 = arith.constant dense<0xFF800000> : vector<8xf32>
    %75 = vector.multi_reduction <maximumf>, %74, %cst_25 [1] : vector<8x8xf32> to vector<8xf32>
    %76 = vector.shape_cast %75 : vector<8xf32> to vector<8x1xf32>
    %77 = vector.broadcast %76 : vector<8x1xf32> to vector<8x8xf32>
    %78 = arith.subf %74, %77 : vector<8x8xf32>
    %79 = math.exp %78 : vector<8x8xf32>
    %cst_26 = arith.constant dense<0.000000e+00> : vector<8xf32>
    %80 = vector.multi_reduction <add>, %79, %cst_26 [1] : vector<8x8xf32> to vector<8xf32>
    %81 = vector.shape_cast %80 : vector<8xf32> to vector<8x1xf32>
    %82 = tpu.reciprocal %81 {approx = true} : vector<8x1xf32> -> vector<8x1xf32>
    %83 = vector.broadcast %82 : vector<8x1xf32> to vector<8x8xf32>
    %84 = arith.mulf %79, %83 : vector<8x8xf32>
    %85 = arith.truncf %84 : vector<8x8xf32> to vector<8x8xbf16>
    %cst_27 = arith.constant dense<0.000000e+00> : vector<8x8xf32>
    %86 = tpu.matmul %85, %71, %cst_27 {dimension_numbers = #tpu.dot_dimension_numbers<[1], [0], [0], [1], [0, 0, 1, 1], [], []>} : vector<8x8xbf16>, vector<8x8xbf16>, vector<8x8xf32> -> vector<8x8xf32>
    %87 = vector.extract_strided_slice %29 {offsets = [0, 24], sizes = [8, 8], strides = [1, 1]} : vector<8x96xbf16> to vector<8x8xbf16>
    %88 = vector.extract_strided_slice %29 {offsets = [0, 56], sizes = [8, 8], strides = [1, 1]} : vector<8x96xbf16> to vector<8x8xbf16>
    %89 = vector.extract_strided_slice %29 {offsets = [0, 88], sizes = [8, 8], strides = [1, 1]} : vector<8x96xbf16> to vector<8x8xbf16>
    %cst_28 = arith.constant dense<0.000000e+00> : vector<8x8xf32>
    %90 = tpu.matmul %87, %88, %cst_28 {dimension_numbers = #tpu.dot_dimension_numbers<[1], [1], [0], [0], [0, 0, 1, 0], [], []>} : vector<8x8xbf16>, vector<8x8xbf16>, vector<8x8xf32> -> vector<8x8xf32>
    %cst_29 = arith.constant 0xFF800000 : f32
    %91 = vector.broadcast %cst_29 : f32 to vector<8x8xf32>
    %92 = arith.select %32, %90, %91 : vector<8x8xi1>, vector<8x8xf32>
    %cst_30 = arith.constant dense<0xFF800000> : vector<8xf32>
    %93 = vector.multi_reduction <maximumf>, %92, %cst_30 [1] : vector<8x8xf32> to vector<8xf32>
    %94 = vector.shape_cast %93 : vector<8xf32> to vector<8x1xf32>
    %95 = vector.broadcast %94 : vector<8x1xf32> to vector<8x8xf32>
    %96 = arith.subf %92, %95 : vector<8x8xf32>
    %97 = math.exp %96 : vector<8x8xf32>
    %cst_31 = arith.constant dense<0.000000e+00> : vector<8xf32>
    %98 = vector.multi_reduction <add>, %97, %cst_31 [1] : vector<8x8xf32> to vector<8xf32>
    %99 = vector.shape_cast %98 : vector<8xf32> to vector<8x1xf32>
    %100 = tpu.reciprocal %99 {approx = true} : vector<8x1xf32> -> vector<8x1xf32>
    %101 = vector.broadcast %100 : vector<8x1xf32> to vector<8x8xf32>
    %102 = arith.mulf %97, %101 : vector<8x8xf32>
    %103 = arith.truncf %102 : vector<8x8xf32> to vector<8x8xbf16>
    %cst_32 = arith.constant dense<0.000000e+00> : vector<8x8xf32>
    %104 = tpu.matmul %103, %89, %cst_32 {dimension_numbers = #tpu.dot_dimension_numbers<[1], [0], [0], [1], [0, 0, 1, 1], [], []>} : vector<8x8xbf16>, vector<8x8xbf16>, vector<8x8xf32> -> vector<8x8xf32>
    %105 = tpu.concatenate %50, %68, %86, %104 in 1 : vector<8x8xf32>, vector<8x8xf32>, vector<8x8xf32>, vector<8x8xf32> -> vector<8x32xf32>
    %106 = arith.truncf %105 : vector<8x32xf32> to vector<8x32xbf16>
    %c0_33 = arith.constant 0 : index
    %c0_34 = arith.constant 0 : index
    %107 = vector.load %arg5[%c0_33, %c0_34] : memref<32x32xbf16, #tpu.memory_space<vmem>>, vector<32x32xbf16>
    %cst_35 = arith.constant dense<0.000000e+00> : vector<8x32xf32>
    %108 = tpu.matmul %106, %107, %cst_35 {dimension_numbers = #tpu.dot_dimension_numbers<[1], [0], [0], [1], [0, 0, 1, 1], [], []>} : vector<8x32xbf16>, vector<32x32xbf16>, vector<8x32xf32> -> vector<8x32xf32>
    %c0_36 = arith.constant 0 : index
    %c0_37 = arith.constant 0 : index
    %109 = vector.load %arg6[%c0_36, %c0_37] : memref<1x32xf32, #tpu.memory_space<vmem>>, vector<1x32xf32>
    %110 = vector.broadcast %109 : vector<1x32xf32> to vector<8x32xf32>
    %111 = arith.addf %108, %110 : vector<8x32xf32>
    %112 = arith.addf %1, %111 : vector<8x32xf32>
    %cst_38 = arith.constant dense<0.000000e+00> : vector<8xf32>
    %113 = vector.multi_reduction <add>, %112, %cst_38 [1] : vector<8x32xf32> to vector<8xf32>
    %114 = vector.shape_cast %113 : vector<8xf32> to vector<8x1xf32>
    %cst_39 = arith.constant 3.200000e+01 : f32
    %115 = vector.broadcast %cst_39 : f32 to vector<8x1xf32>
    %116 = arith.divf %114, %115 : vector<8x1xf32>
    %117 = vector.broadcast %116 : vector<8x1xf32> to vector<8x32xf32>
    %118 = arith.subf %112, %117 : vector<8x32xf32>
    %119 = arith.mulf %118, %118 : vector<8x32xf32>
    %cst_40 = arith.constant dense<0.000000e+00> : vector<8xf32>
    %120 = vector.multi_reduction <add>, %119, %cst_40 [1] : vector<8x32xf32> to vector<8xf32>
    %121 = vector.shape_cast %120 : vector<8xf32> to vector<8x1xf32>
    %cst_41 = arith.constant 3.200000e+01 : f32
    %122 = vector.broadcast %cst_41 : f32 to vector<8x1xf32>
    %123 = arith.divf %121, %122 : vector<8x1xf32>
    %124 = vector.broadcast %116 : vector<8x1xf32> to vector<8x32xf32>
    %125 = arith.subf %112, %124 : vector<8x32xf32>
    %cst_42 = arith.constant 9.99999974E-6 : f32
    %126 = vector.broadcast %cst_42 : f32 to vector<8x1xf32>
    %127 = arith.addf %123, %126 : vector<8x1xf32>
    %128 = math.rsqrt %127 : vector<8x1xf32>
    %129 = vector.broadcast %128 : vector<8x1xf32> to vector<8x32xf32>
    %130 = arith.mulf %125, %129 : vector<8x32xf32>
    %c0_43 = arith.constant 0 : index
    %c0_44 = arith.constant 0 : index
    %131 = vector.load %arg7[%c0_43, %c0_44] : memref<1x32xf32, #tpu.memory_space<vmem>>, vector<1x32xf32>
    %132 = vector.broadcast %131 : vector<1x32xf32> to vector<8x32xf32>
    %133 = arith.mulf %130, %132 : vector<8x32xf32>
    %c0_45 = arith.constant 0 : index
    %c0_46 = arith.constant 0 : index
    %134 = vector.load %arg8[%c0_45, %c0_46] : memref<1x32xf32, #tpu.memory_space<vmem>>, vector<1x32xf32>
    %135 = vector.broadcast %134 : vector<1x32xf32> to vector<8x32xf32>
    %136 = arith.addf %133, %135 : vector<8x32xf32>
    %137 = arith.truncf %136 : vector<8x32xf32> to vector<8x32xbf16>
    %c0_47 = arith.constant 0 : index
    %c0_48 = arith.constant 0 : index
    %138 = vector.load %arg9[%c0_47, %c0_48] : memref<32x128xbf16, #tpu.memory_space<vmem>>, vector<32x128xbf16>
    %cst_49 = arith.constant dense<0.000000e+00> : vector<8x128xf32>
    %139 = tpu.matmul %137, %138, %cst_49 {dimension_numbers = #tpu.dot_dimension_numbers<[1], [0], [0], [1], [0, 0, 1, 1], [], []>} : vector<8x32xbf16>, vector<32x128xbf16>, vector<8x128xf32> -> vector<8x128xf32>
    %c0_50 = arith.constant 0 : index
    %c0_51 = arith.constant 0 : index
    %140 = vector.load %arg10[%c0_50, %c0_51] : memref<1x128xf32, #tpu.memory_space<vmem>>, vector<1x128xf32>
    %141 = vector.broadcast %140 : vector<1x128xf32> to vector<8x128xf32>
    %142 = arith.addf %139, %141 : vector<8x128xf32>
    %cst_52 = arith.constant 0.000000e+00 : f32
    %143 = vector.broadcast %cst_52 : f32 to vector<8x128xf32>
    %144 = arith.maximumf %142, %143 : vector<8x128xf32>
    %145 = arith.truncf %144 : vector<8x128xf32> to vector<8x128xbf16>
    %c0_53 = arith.constant 0 : index
    %c0_54 = arith.constant 0 : index
    %146 = vector.load %arg11[%c0_53, %c0_54] : memref<128x32xbf16, #tpu.memory_space<vmem>>, vector<128x32xbf16>
    %cst_55 = arith.constant dense<0.000000e+00> : vector<8x32xf32>
    %147 = tpu.matmul %145, %146, %cst_55 {dimension_numbers = #tpu.dot_dimension_numbers<[1], [0], [0], [1], [0, 0, 1, 1], [], []>} : vector<8x128xbf16>, vector<128x32xbf16>, vector<8x32xf32> -> vector<8x32xf32>
    %c0_56 = arith.constant 0 : index
    %c0_57 = arith.constant 0 : index
    %148 = vector.load %arg12[%c0_56, %c0_57] : memref<1x32xf32, #tpu.memory_space<vmem>>, vector<1x32xf32>
    %149 = vector.broadcast %148 : vector<1x32xf32> to vector<8x32xf32>
    %150 = arith.addf %147, %149 : vector<8x32xf32>
    %151 = arith.addf %112, %150 : vector<8x32xf32>
    %152 = vector.shape_cast %151 : vector<8x32xf32> to vector<1x8x32xf32>
    %c0_58 = arith.constant 0 : index
    %c0_59 = arith.constant 0 : index
    %c0_60 = arith.constant 0 : index
    %153 = vector.load %arg13[%c0_58, %c0_59, %c0_60] : memref<1x8x32xf32, #tpu.memory_space<vmem>>, vector<1x8x32xf32>
    tpu.vector_store %arg13[%c0_58, %c0_59, %c0_60], %152 {strides = array<i32>} : memref<1x8x32xf32, #tpu.memory_space<vmem>>, vector<1x8x32xf32>,
    return
  }
  func.func @transform_0(%arg0: i32) -> (i32, i32, i32) {
    %c0_i32 = arith.constant 0 : i32
    %c0_i32_0 = arith.constant 0 : i32
    %c0_i32_1 = arith.constant 0 : i32
    return %arg0, %c0_i32, %c0_i32_0 : i32, i32, i32
  }
  func.func @transform_1(%arg0: i32) -> (i32, i32) {
    %c0_i32 = arith.constant 0 : i32
    %c0_i32_0 = arith.constant 0 : i32
    %c0_i32_1 = arith.constant 0 : i32
    return %c0_i32, %c0_i32_0 : i32, i32
  }
  func.func @transform_2(%arg0: i32) -> (i32, i32) {
    %c0_i32 = arith.constant 0 : i32
    %c0_i32_0 = arith.constant 0 : i32
    %c0_i32_1 = arith.constant 0 : i32
    return %c0_i32, %c0_i32_0 : i32, i32
  }
  func.func @transform_3(%arg0: i32) -> (i32, i32) {
    %c0_i32 = arith.constant 0 : i32
    %c0_i32_0 = arith.constant 0 : i32
    %c0_i32_1 = arith.constant 0 : i32
    return %c0_i32, %c0_i32_0 : i32, i32
  }
  func.func @transform_4(%arg0: i32) -> (i32, i32) {
    %c0_i32 = arith.constant 0 : i32
    %c0_i32_0 = arith.constant 0 : i32
    %c0_i32_1 = arith.constant 0 : i32
    return %c0_i32, %c0_i32_0 : i32, i32
  }
  func.func @transform_5(%arg0: i32) -> (i32, i32) {
    %c0_i32 = arith.constant 0 : i32
    %c0_i32_0 = arith.constant 0 : i32
    %c0_i32_1 = arith.constant 0 : i32
    return %c0_i32, %c0_i32_0 : i32, i32
  }
  func.func @transform_6(%arg0: i32) -> (i32, i32) {
    %c0_i32 = arith.constant 0 : i32
    %c0_i32_0 = arith.constant 0 : i32
    %c0_i32_1 = arith.constant 0 : i32
    return %c0_i32, %c0_i32_0 : i32, i32
  }
  func.func @transform_7(%arg0: i32) -> (i32, i32) {
    %c0_i32 = arith.constant 0 : i32
    %c0_i32_0 = arith.constant 0 : i32
    %c0_i32_1 = arith.constant 0 : i32
    return %c0_i32, %c0_i32_0 : i32, i32
  }
  func.func @transform_8(%arg0: i32) -> (i32, i32) {
    %c0_i32 = arith.constant 0 : i32
    %c0_i32_0 = arith.constant 0 : i32
    %c0_i32_1 = arith.constant 0 : i32
    return %c0_i32, %c0_i32_0 : i32, i32
  }
  func.func @transform_9(%arg0: i32) -> (i32, i32) {
    %c0_i32 = arith.constant 0 : i32
    %c0_i32_0 = arith.constant 0 : i32
    %c0_i32_1 = arith.constant 0 : i32
    return %c0_i32, %c0_i32_0 : i32, i32
  }
  func.func @transform_10(%arg0: i32) -> (i32, i32) {
    %c0_i32 = arith.constant 0 : i32
    %c0_i32_0 = arith.constant 0 : i32
    %c0_i32_1 = arith.constant 0 : i32
    return %c0_i32, %c0_i32_0 : i32, i32
  }
  func.func @transform_11(%arg0: i32) -> (i32, i32) {
    %c0_i32 = arith.constant 0 : i32
    %c0_i32_0 = arith.constant 0 : i32
    %c0_i32_1 = arith.constant 0 : i32
    return %c0_i32, %c0_i32_0 : i32, i32
  }
  func.func @transform_12(%arg0: i32) -> (i32, i32, i32) {
    %c0_i32 = arith.constant 0 : i32
    %c0_i32_0 = arith.constant 0 : i32
    %c0_i32_1 = arith.constant 0 : i32
    return %arg0, %c0_i32, %c0_i32_0 : i32, i32, i32
  }
}

</mosaic_0001>

<llo_original>
// kernel: tpu_custom_call.1
$region0: #{tpu_custom_call.1}
  #allocation0 [shape = 'u32[]', space=smem, size = 0x4, offset = 0x4, fixed_abs, tag = 'smem constant byte address 0x4 - core index']
  #allocation1 [shape = 'u32[144,128]{1,0:T(1,128)}', space=vmem, size = 0x12000, scoped, tag = 'internal scratch']
  %s0 = inlined_call_operand.vmem [shape: f32[2,8,32], index: 0, kind: input, shape index: {}]
  %s1 = inlined_call_operand.vmem [shape: f32[1,32], index: 1, kind: input, shape index: {}]
  %s2 = inlined_call_operand.vmem [shape: f32[1,32], index: 2, kind: input, shape index: {}]
  %s3 = inlined_call_operand.vmem [shape: bf16[32,96], index: 3, kind: input, shape index: {}]
  %s4 = inlined_call_operand.vmem [shape: bf16[32,32], index: 4, kind: input, shape index: {}]
  %s5 = inlined_call_operand.vmem [shape: f32[1,32], index: 5, kind: input, shape index: {}]
  %s6 = inlined_call_operand.vmem [shape: f32[1,32], index: 6, kind: input, shape index: {}]
  %s7 = inlined_call_operand.vmem [shape: f32[1,32], index: 7, kind: input, shape index: {}]
  %s8 = inlined_call_operand.vmem [shape: bf16[32,128], index: 8, kind: input, shape index: {}]
  %s9 = inlined_call_operand.vmem [shape: f32[1,128], index: 9, kind: input, shape index: {}]
  %s10 = inlined_call_operand.vmem [shape: bf16[128,32], index: 10, kind: input, shape index: {}]
  %s11 = inlined_call_operand.vmem [shape: f32[1,32], index: 11, kind: input, shape index: {}]
  %s12 = inlined_call_operand.hbm [shape: f32[2,8,32], index: 12, kind: output, shape index: {}]
  %s13 = sld [smem:[#allocation0]]
  $region81: #{tpu_custom_call.1} parent=0
    _
  %s15 = ssub.s32 1, %s13
  %s16 = scalar_select 0, %s15, %s13
  $region1: #{tpu_custom_call.1} parent=0
    #allocation2 [shape = 'u8[8192]{0}', space=vmem, size = 0x2000, scoped, tag = 'output window, operand 0']
    #allocation3 [shape = 's32[2]{0}', space=sflag, size = 0x8, scoped, tag = 'scoped memory for tpu_custom_call.1']
    %17 = vsyncpa [#allocation3], 0
    %s18 = scalar_lea.sflag [#allocation3], 1
    %19 = vsyncpa %s18, 0
    loop: start=0, step=1, limit=4
    $region2: #{tpu_custom_call.1} parent=1 // loop_pre_header
      _
    $region3: #{tpu_custom_call.1} parent=1 // loop_header
      %s21 = sphi 0, %s25
      %p22 = scmp.ge.s32.totalorder %s21, 4
      %s31 = sphi 0, %s33
      %s34 = sphi 0, %s31
      %s35 = sphi 0, %s34
      %s51 = sphi 0, %s35
      %s55 = sphi 0, %s55
      %s57 = sphi 0, %s55
      %s58 = sphi 0, %s57
      %s72 = sphi 0, %s58
      %s76 = sphi 0, %s76
      %s78 = sphi 0, %s76
      %s79 = sphi 0, %s78
      %s93 = sphi 0, %s79
      %s97 = sphi 0, %s97
      %s99 = sphi 0, %s97
      %s100 = sphi 0, %s99
      %s114 = sphi 0, %s100
      %s118 = sphi 0, %s118
      %s120 = sphi 0, %s118
      %s121 = sphi 0, %s120
      %s135 = sphi 0, %s121
      %s139 = sphi 0, %s139
      %s141 = sphi 0, %s139
      %s142 = sphi 0, %s141
      %s156 = sphi 0, %s142
      %s160 = sphi 0, %s160
      %s162 = sphi 0, %s160
      %s163 = sphi 0, %s162
      %s177 = sphi 0, %s163
      %s181 = sphi 0, %s181
      %s183 = sphi 0, %s181
      %s184 = sphi 0, %s183
      %s198 = sphi 0, %s184
      %s202 = sphi 0, %s202
      %s204 = sphi 0, %s202
      %s205 = sphi 0, %s204
      %s219 = sphi 0, %s205
      %s223 = sphi 0, %s223
      %s225 = sphi 0, %s223
      %s226 = sphi 0, %s225
      %s240 = sphi 0, %s226
      %s244 = sphi 0, %s244
      %s246 = sphi 0, %s244
      %s247 = sphi 0, %s246
      %s261 = sphi 0, %s247
      %s265 = sphi 0, %s265
      %s267 = sphi 0, %s265
      %s268 = sphi 0, %s267
      %s282 = sphi 0, %s268
      %s288 = sphi 0, %s290
      %s291 = sphi 0, %s288
      %s292 = sphi 0, %s291
      %s308 = sphi 0, %s292
    $region4: #{tpu_custom_call.1} parent=1 // loop_header_branch
      %24 = sbr.rel (%p22) target = $region8
    $region5: #{tpu_custom_call.1} parent=1 // loop_body
      %s26 = ssub.s32 %s21, 1
      %s27 = ssub.s32 %s21, 2
      %s28 = sadd.s32 %s21, 1
      %s29 = ssub.s32 %s21, %s28
      %p30 = scmp.eq.s32.totalorder %s29, 0
      %s32 = sadd.s32 %s31, 1
      %s33 = scalar_select %p30, %s31, %s32
      %p36 = pneg %p30
      %p37 = scmp.eq.s32.totalorder %s21, 1
      %p38 = por %p36, %p37
      %p39 = scmp.ne.s32.totalorder %s31, %s34
      %p40 = scmp.eq.s32.totalorder %s21, 0
      %p41 = por %p39, %p40
      %p42 = scmp.ne.s32.totalorder %s31, %s34
      %p43 = scmp.eq.s32.totalorder %s26, 1
      %p44 = por %p42, %p43
      %p45 = scmp.ne.s32.totalorder %s34, %s35
      %p46 = scmp.eq.s32.totalorder %s26, 0
      %p47 = por %p45, %p46
      %p48 = scmp.ne.s32.totalorder %s34, %s35
      %p49 = scmp.eq.s32.totalorder %s27, 1
      %p50 = por %p48, %p49
      %p52 = scmp.ne.s32.totalorder %s35, %s51
      %p53 = scmp.eq.s32.totalorder %s27, 0
      %p54 = por %p52, %p53
      %s56 = sadd.s32 %s55, 1
      %p59 = scmp.eq.s32.totalorder %s21, 1
      %p60 = scmp.ne.s32.totalorder %s55, %s57
      %p61 = scmp.eq.s32.totalorder %s21, 0
      %p62 = por %p60, %p61
      %p63 = scmp.ne.s32.totalorder %s55, %s57
      %p64 = scmp.eq.s32.totalorder %s26, 1
      %p65 = por %p63, %p64
      %p66 = scmp.ne.s32.totalorder %s57, %s58
      %p67 = scmp.eq.s32.totalorder %s26, 0
      %p68 = por %p66, %p67
      %p69 = scmp.ne.s32.totalorder %s57, %s58
      %p70 = scmp.eq.s32.totalorder %s27, 1
      %p71 = por %p69, %p70
      %p73 = scmp.ne.s32.totalorder %s58, %s72
      %p74 = scmp.eq.s32.totalorder %s27, 0
      %p75 = por %p73, %p74
      %s77 = sadd.s32 %s76, 1
      %p80 = scmp.eq.s32.totalorder %s21, 1
      %p81 = scmp.ne.s32.totalorder %s76, %s78
      %p82 = scmp.eq.s32.totalorder %s21, 0
      %p83 = por %p81, %p82
      %p84 = scmp.ne.s32.totalorder %s76, %s78
      %p85 = scmp.eq.s32.totalorder %s26, 1
      %p86 = por %p84, %p85
      %p87 = scmp.ne.s32.totalorder %s78, %s79
      %p88 = scmp.eq.s32.totalorder %s26, 0
      %p89 = por %p87, %p88
      %p90 = scmp.ne.s32.totalorder %s78, %s79
      %p91 = scmp.eq.s32.totalorder %s27, 1
      %p92 = por %p90, %p91
      %p94 = scmp.ne.s32.totalorder %s79, %s93
      %p95 = scmp.eq.s32.totalorder %s27, 0
      %p96 = por %p94, %p95
      %s98 = sadd.s32 %s97, 1
      %p101 = scmp.eq.s32.totalorder %s21, 1
      %p102 = scmp.ne.s32.totalorder %s97, %s99
      %p103 = scmp.eq.s32.totalorder %s21, 0
      %p104 = por %p102, %p103
      %p105 = scmp.ne.s32.totalorder %s97, %s99
      %p106 = scmp.eq.s32.totalorder %s26, 1
      %p107 = por %p105, %p106
      %p108 = scmp.ne.s32.totalorder %s99, %s100
      %p109 = scmp.eq.s32.totalorder %s26, 0
      %p110 = por %p108, %p109
      %p111 = scmp.ne.s32.totalorder %s99, %s100
      %p112 = scmp.eq.s32.totalorder %s27, 1
      %p113 = por %p111, %p112
      %p115 = scmp.ne.s32.totalorder %s100, %s114
      %p116 = scmp.eq.s32.totalorder %s27, 0
      %p117 = por %p115, %p116
      %s119 = sadd.s32 %s118, 1
      %p122 = scmp.eq.s32.totalorder %s21, 1
      %p123 = scmp.ne.s32.totalorder %s118, %s120
      %p124 = scmp.eq.s32.totalorder %s21, 0
      %p125 = por %p123, %p124
      %p126 = scmp.ne.s32.totalorder %s118, %s120
      %p127 = scmp.eq.s32.totalorder %s26, 1
      %p128 = por %p126, %p127
      %p129 = scmp.ne.s32.totalorder %s120, %s121
      %p130 = scmp.eq.s32.totalorder %s26, 0
      %p131 = por %p129, %p130
      %p132 = scmp.ne.s32.totalorder %s120, %s121
      %p133 = scmp.eq.s32.totalorder %s27, 1
      %p134 = por %p132, %p133
      %p136 = scmp.ne.s32.totalorder %s121, %s135
      %p137 = scmp.eq.s32.totalorder %s27, 0
      %p138 = por %p136, %p137
      %s140 = sadd.s32 %s139, 1
      %p143 = scmp.eq.s32.totalorder %s21, 1
      %p144 = scmp.ne.s32.totalorder %s139, %s141
      %p145 = scmp.eq.s32.totalorder %s21, 0
      %p146 = por %p144, %p145
      %p147 = scmp.ne.s32.totalorder %s139, %s141
      %p148 = scmp.eq.s32.totalorder %s26, 1
      %p149 = por %p147, %p148
      %p150 = scmp.ne.s32.totalorder %s141, %s142
      %p151 = scmp.eq.s32.totalorder %s26, 0
      %p152 = por %p150, %p151
      %p153 = scmp.ne.s32.totalorder %s141, %s142
      %p154 = scmp.eq.s32.totalorder %s27, 1
      %p155 = por %p153, %p154
      %p157 = scmp.ne.s32.totalorder %s142, %s156
      %p158 = scmp.eq.s32.totalorder %s27, 0
      %p159 = por %p157, %p158
      %s161 = sadd.s32 %s160, 1
      %p164 = scmp.eq.s32.totalorder %s21, 1
      %p165 = scmp.ne.s32.totalorder %s160, %s162
      %p166 = scmp.eq.s32.totalorder %s21, 0
      %p167 = por %p165, %p166
      %p168 = scmp.ne.s32.totalorder %s160, %s162
      %p169 = scmp.eq.s32.totalorder %s26, 1
      %p170 = por %p168, %p169
      %p171 = scmp.ne.s32.totalorder %s162, %s163
      %p172 = scmp.eq.s32.totalorder %s26, 0
      %p173 = por %p171, %p172
      %p174 = scmp.ne.s32.totalorder %s162, %s163
      %p175 = scmp.eq.s32.totalorder %s27, 1
      %p176 = por %p174, %p175
      %p178 = scmp.ne.s32.totalorder %s163, %s177
      %p179 = scmp.eq.s32.totalorder %s27, 0
      %p180 = por %p178, %p179
      %s182 = sadd.s32 %s181, 1
      %p185 = scmp.eq.s32.totalorder %s21, 1
      %p186 = scmp.ne.s32.totalorder %s181, %s183
      %p187 = scmp.eq.s32.totalorder %s21, 0
      %p188 = por %p186, %p187
      %p189 = scmp.ne.s32.totalorder %s181, %s183
      %p190 = scmp.eq.s32.totalorder %s26, 1
      %p191 = por %p189, %p190
      %p192 = scmp.ne.s32.totalorder %s183, %s184
      %p193 = scmp.eq.s32.totalorder %s26, 0
      %p194 = por %p192, %p193
      %p195 = scmp.ne.s32.totalorder %s183, %s184
      %p196 = scmp.eq.s32.totalorder %s27, 1
      %p197 = por %p195, %p196
      %p199 = scmp.ne.s32.totalorder %s184, %s198
      %p200 = scmp.eq.s32.totalorder %s27, 0
      %p201 = por %p199, %p200
      %s203 = sadd.s32 %s202, 1
      %p206 = scmp.eq.s32.totalorder %s21, 1
      %p207 = scmp.ne.s32.totalorder %s202, %s204
      %p208 = scmp.eq.s32.totalorder %s21, 0
      %p209 = por %p207, %p208
      %p210 = scmp.ne.s32.totalorder %s202, %s204
      %p211 = scmp.eq.s32.totalorder %s26, 1
      %p212 = por %p210, %p211
      %p213 = scmp.ne.s32.totalorder %s204, %s205
      %p214 = scmp.eq.s32.totalorder %s26, 0
      %p215 = por %p213, %p214
      %p216 = scmp.ne.s32.totalorder %s204, %s205
      %p217 = scmp.eq.s32.totalorder %s27, 1
      %p218 = por %p216, %p217
      %p220 = scmp.ne.s32.totalorder %s205, %s219
      %p221 = scmp.eq.s32.totalorder %s27, 0
      %p222 = por %p220, %p221
      %s224 = sadd.s32 %s223, 1
      %p227 = scmp.eq.s32.totalorder %s21, 1
      %p228 = scmp.ne.s32.totalorder %s223, %s225
      %p229 = scmp.eq.s32.totalorder %s21, 0
      %p230 = por %p228, %p229
      %p231 = scmp.ne.s32.totalorder %s223, %s225
      %p232 = scmp.eq.s32.totalorder %s26, 1
      %p233 = por %p231, %p232
      %p234 = scmp.ne.s32.totalorder %s225, %s226
      %p235 = scmp.eq.s32.totalorder %s26, 0
      %p236 = por %p234, %p235
      %p237 = scmp.ne.s32.totalorder %s225, %s226
      %p238 = scmp.eq.s32.totalorder %s27, 1
      %p239 = por %p237, %p238
      %p241 = scmp.ne.s32.totalorder %s226, %s240
      %p242 = scmp.eq.s32.totalorder %s27, 0
      %p243 = por %p241, %p242
      %s245 = sadd.s32 %s244, 1
      %p248 = scmp.eq.s32.totalorder %s21, 1
      %p249 = scmp.ne.s32.totalorder %s244, %s246
      %p250 = scmp.eq.s32.totalorder %s21, 0
      %p251 = por %p249, %p250
      %p252 = scmp.ne.s32.totalorder %s244, %s246
      %p253 = scmp.eq.s32.totalorder %s26, 1
      %p254 = por %p252, %p253
      %p255 = scmp.ne.s32.totalorder %s246, %s247
      %p256 = scmp.eq.s32.totalorder %s26, 0
      %p257 = por %p255, %p256
      %p258 = scmp.ne.s32.totalorder %s246, %s247
      %p259 = scmp.eq.s32.totalorder %s27, 1
      %p260 = por %p258, %p259
      %p262 = scmp.ne.s32.totalorder %s247, %s261
      %p263 = scmp.eq.s32.totalorder %s27, 0
      %p264 = por %p262, %p263
      %s266 = sadd.s32 %s265, 1
      %p269 = scmp.eq.s32.totalorder %s21, 1
      %p270 = scmp.ne.s32.totalorder %s265, %s267
      %p271 = scmp.eq.s32.totalorder %s21, 0
      %p272 = por %p270, %p271
      %p273 = scmp.ne.s32.totalorder %s265, %s267
      %p274 = scmp.eq.s32.totalorder %s26, 1
      %p275 = por %p273, %p274
      %p276 = scmp.ne.s32.totalorder %s267, %s268
      %p277 = scmp.eq.s32.totalorder %s26, 0
      %p278 = por %p276, %p277
      %p279 = scmp.ne.s32.totalorder %s267, %s268
      %p280 = scmp.eq.s32.totalorder %s27, 1
      %p281 = por %p279, %p280
      %p283 = scmp.ne.s32.totalorder %s268, %s282
      %p284 = scmp.eq.s32.totalorder %s27, 0
      %p285 = por %p283, %p284
      %s286 = ssub.s32 %s21, %s28
      %p287 = scmp.eq.s32.totalorder %s286, 0
      %s289 = sadd.s32 %s288, 1
      %s290 = scalar_select %p287, %s288, %s289
      %p293 = pneg %p287
      %p294 = scmp.eq.s32.totalorder %s21, 1
      %p295 = por %p293, %p294
      %p296 = scmp.ne.s32.totalorder %s288, %s291
      %p297 = scmp.eq.s32.totalorder %s21, 0
      %p298 = por %p296, %p297
      %p299 = scmp.ne.s32.totalorder %s288, %s291
      %p300 = scmp.eq.s32.totalorder %s26, 1
      %p301 = por %p299, %p300
      %p302 = scmp.ne.s32.totalorder %s291, %s292
      %p303 = scmp.eq.s32.totalorder %s26, 0
      %p304 = por %p302, %p303
      %p305 = scmp.ne.s32.totalorder %s291, %s292
      %p306 = scmp.eq.s32.totalorder %s27, 1
      %p307 = por %p305, %p306
      %p309 = scmp.ne.s32.totalorder %s292, %s308
      %p310 = scmp.eq.s32.totalorder %s27, 0
      %p311 = por %p309, %p310
      %p312 = scmp.le.s32.totalorder 1, %s21
      %p313 = scmp.lt.s32.totalorder %s21, 3
      %p314 = pnand %p312, %p313
      %p315 = pneg %p314
      // Predicated region
      $region9: #{tpu_custom_call.1} parent=5 // pred_check
        _
      $region10: #{tpu_custom_call.1} parent=5 // pred_check_branch
        %317 = sbr.rel (%p314) target = $region12
      $region11: #{tpu_custom_call.1} parent=5 // pred_region
        %s318 = ssub.s32 %s21, 1
        // Predicated region
        $region13: #{tpu_custom_call.1} parent=11 // pred_check
          %p319 = pneg %p68
        $region14: #{tpu_custom_call.1} parent=11 // pred_check_branch
          %321 = sbr.rel (%p319) target = $region16
        $region15: #{tpu_custom_call.1} parent=11 // pred_region
          _
        $region16: #{tpu_custom_call.1} parent=11 // pred_fallthru
          _
        // Predicated region
        $region17: #{tpu_custom_call.1} parent=11 // pred_check
          %p322 = pneg %p89
        $region18: #{tpu_custom_call.1} parent=11 // pred_check_branch
          %324 = sbr.rel (%p322) target = $region20
        $region19: #{tpu_custom_call.1} parent=11 // pred_region
          _
        $region20: #{tpu_custom_call.1} parent=11 // pred_fallthru
          _
        // Predicated region
        $region21: #{tpu_custom_call.1} parent=11 // pred_check
          %p325 = pneg %p110
        $region22: #{tpu_custom_call.1} parent=11 // pred_check_branch
          %327 = sbr.rel (%p325) target = $region24
        $region23: #{tpu_custom_call.1} parent=11 // pred_region
          _
        $region24: #{tpu_custom_call.1} parent=11 // pred_fallthru
          _
        // Predicated region
        $region25: #{tpu_custom_call.1} parent=11 // pred_check
          %p328 = pneg %p131
        $region26: #{tpu_custom_call.1} parent=11 // pred_check_branch
          %330 = sbr.rel (%p328) target = $region28
        $region27: #{tpu_custom_call.1} parent=11 // pred_region
          _
        $region28: #{tpu_custom_call.1} parent=11 // pred_fallthru
          _
        // Predicated region
        $region29: #{tpu_custom_call.1} parent=11 // pred_check
          %p331 = pneg %p152
        $region30: #{tpu_custom_call.1} parent=11 // pred_check_branch
          %333 = sbr.rel (%p331) target = $region32
        $region31: #{tpu_custom_call.1} parent=11 // pred_region
          _
        $region32: #{tpu_custom_call.1} parent=11 // pred_fallthru
          _
        // Predicated region
        $region33: #{tpu_custom_call.1} parent=11 // pred_check
          %p334 = pneg %p173
        $region34: #{tpu_custom_call.1} parent=11 // pred_check_branch
          %336 = sbr.rel (%p334) target = $region36
        $region35: #{tpu_custom_call.1} parent=11 // pred_region
          _
        $region36: #{tpu_custom_call.1} parent=11 // pred_fallthru
          _
        // Predicated region
        $region37: #{tpu_custom_call.1} parent=11 // pred_check
          %p337 = pneg %p194
        $region38: #{tpu_custom_call.1} parent=11 // pred_check_branch
          %339 = sbr.rel (%p337) target = $region40
        $region39: #{tpu_custom_call.1} parent=11 // pred_region
          _
        $region40: #{tpu_custom_call.1} parent=11 // pred_fallthru
          _
        // Predicated region
        $region41: #{tpu_custom_call.1} parent=11 // pred_check
          %p340 = pneg %p215
        $region42: #{tpu_custom_call.1} parent=11 // pred_check_branch
          %342 = sbr.rel (%p340) target = $region44
        $region43: #{tpu_custom_call.1} parent=11 // pred_region
          _
        $region44: #{tpu_custom_call.1} parent=11 // pred_fallthru
          _
        // Predicated region
        $region45: #{tpu_custom_call.1} parent=11 // pred_check
          %p343 = pneg %p236
        $region46: #{tpu_custom_call.1} parent=11 // pred_check_branch
          %345 = sbr.rel (%p343) target = $region48
        $region47: #{tpu_custom_call.1} parent=11 // pred_region
          _
        $region48: #{tpu_custom_call.1} parent=11 // pred_fallthru
          _
        // Predicated region
        $region49: #{tpu_custom_call.1} parent=11 // pred_check
          %p346 = pneg %p257
        $region50: #{tpu_custom_call.1} parent=11 // pred_check_branch
          %348 = sbr.rel (%p346) target = $region52
        $region51: #{tpu_custom_call.1} parent=11 // pred_region
          _
        $region52: #{tpu_custom_call.1} parent=11 // pred_fallthru
          _
        // Predicated region
        $region53: #{tpu_custom_call.1} parent=11 // pred_check
          %p349 = pneg %p278
        $region54: #{tpu_custom_call.1} parent=11 // pred_check_branch
          %351 = sbr.rel (%p349) target = $region56
        $region55: #{tpu_custom_call.1} parent=11 // pred_region
          _
        $region56: #{tpu_custom_call.1} parent=11 // pred_fallthru
          _
      $region12: #{tpu_custom_call.1} parent=5 // pred_fallthru
        _
      %p352 = scmp.lt.s32.totalorder %s21, 2
      // Predicated region
      $region57: #{tpu_custom_call.1} parent=5 // pred_check
        %p353 = pneg %p352
      $region58: #{tpu_custom_call.1} parent=5 // pred_check_branch
        %355 = sbr.rel (%p353) target = $region60
      $region59: #{tpu_custom_call.1} parent=5 // pred_region
        // Predicated region
        $region61: #{tpu_custom_call.1} parent=59 // pred_check
          %p356 = pneg %p41
        $region62: #{tpu_custom_call.1} parent=59 // pred_check_branch
          %358 = sbr.rel (%p356) target = $region64
        $region63: #{tpu_custom_call.1} parent=59 // pred_region
          %p359 = scmp.lt.s32.totalorder %s21, 1
          %s360 = scalar_select %p359, %s21, 1
          %s361 = smul.addr %s360, 8
          %s362 = scalar_lea.vmem %s0, %s361
        $region64: #{tpu_custom_call.1} parent=59 // pred_fallthru
          _
      $region60: #{tpu_custom_call.1} parent=5 // pred_fallthru
        _
      %p363 = scmp.le.s32.totalorder 1, %s21
      %p364 = scmp.lt.s32.totalorder %s21, 3
      %p365 = pnand %p363, %p364
      %p366 = pneg %p365
      // Predicated region
      $region65: #{tpu_custom_call.1} parent=5 // pred_check
        _
      $region66: #{tpu_custom_call.1} parent=5 // pred_check_branch
        %368 = sbr.rel (%p365) target = $region68
      $region67: #{tpu_custom_call.1} parent=5 // pred_region
        %s369 = ssub.s32 %s21, 1
        %p370 = scmp.lt.s32.totalorder %s26, 1
        %s371 = scalar_select %p370, %s26, 1
        %s372 = smul.addr %s371, 8
        %s373 = scalar_lea.vmem %s0, %s372
        %p374 = pneg %p47
        %p375 = pneg %p44
        %p376 = pneg %p68
        %p377 = pneg %p65
        %p378 = pneg %p89
        %p379 = pneg %p86
        %p380 = pneg %p110
        %p381 = pneg %p107
        %p382 = pneg %p131
        %p383 = pneg %p128
        %p384 = pneg %p152
        %p385 = pneg %p149
        %p386 = pneg %p173
        %p387 = pneg %p170
        %p388 = pneg %p194
        %p389 = pneg %p191
        %p390 = pneg %p215
        %p391 = pneg %p212
        %p392 = pneg %p236
        %p393 = pneg %p233
        %p394 = pneg %p257
        %p395 = pneg %p254
        %p396 = pneg %p278
        %p397 = pneg %p275
        %p398 = pneg %p304
        %p399 = pneg %p301
        %s400 = sand.u32 %s291, 1
        %s401 = scalar_lea.sflag [#allocation3], %s400
        %s402 = sand.u32 %s291, 1
        %s403 = smul.addr %s402, 8
        %s404 = scalar_lea.vmem [#allocation2], %s403
        %p405 = scmp.lt.s32.totalorder %s26, 1
        %s406 = scalar_select %p405, %s26, 1
        %s407 = smul.addr %s406, 8
        %s408 = scalar_lea.vmem %s0, %s407
        %v410 = vld [vmem:[%s408] sm:$0xff]
        %vm411 = vcmask 261120
        %v412 = vsel %vm411, %v410, 0.0
        %413 = vadd.xlane.f32.xlu0 %v412
        %v414 = vpop.xlane.xlu0 %413
        %v415 = vrcp.pop 32.0
        %v416 = vmul.f32 %v414, %v415
        %v417 = vsub.f32 %v410, %v416
        %v418 = vmul.f32 %v417, %v417
        %v419 = vsel %vm411, %v418, 0.0
        %420 = vadd.xlane.f32.xlu0 %v419
        %v421 = vpop.xlane.xlu0 %420
        %v422 = vmul.f32 %v421, %v415
        %v423 = vadd.f32 %v422, 1e-05
        %v424 = vrsqrt.pop %v423
        %v425 = vmul.f32 %v417, %v424
        %v426 = vld [vmem:[%s1] sm:$0x1]
        %v428 = vlaneseq
        %v429 = vshrl.u32 %v428, 7
        %v430 = vsub.s32 0, %v429
        %v431 = vrot.slane %v426, %v430
        %v433 = vmul.f32 %v425, %v431
        %v434 = vld [vmem:[%s2] sm:$0x1]
        %v436 = vlaneseq
        %v437 = vshrl.u32 %v436, 7
        %v438 = vsub.s32 0, %v437
        %v439 = vrot.slane %v434, %v438
        %v441 = vadd.f32 %v433, %v439
        %v442 = vpack.c.bf16 %v441, %v441
        %v443 = vld [vmem:[%s3] sm:$0xf]
        %v444 = vld [vmem:[%s3 + $0x4] sm:$0xf]
        %v445 = vld [vmem:[%s3 + $0x8] sm:$0xf]
        %v446 = vld [vmem:[%s3 + $0xc] sm:$0xf]
        %v451 = vunpack.c.l.b16 %v443
        %v452 = vunpack.c.l.b16 %v444
        %v453 = vunpack.c.l.b16 %v445
        %v454 = vunpack.c.l.b16 %v446
        %v455 = vpack.c.b16 %v452, %v451
        %v456 = vpack.c.b16 %v454, %v453
        %v460 = vsel %vm411, %v442, 0
        %462 = vmatprep.subr.bf16.mxu0 0
        %463 = vmatpush1.bf16.msra.mxu0 %v455
        %464 = vmatprep.subr.bf16.mxu0 0
        %465 = vmatpush1.bf16.msra.mxu0 %v456
        %466 = vmatprep.subr.bf16.mxu0 0
        %467 = vmatpush1.bf16.msra.mxu0 0
        %468 = vmatprep.subr.bf16.mxu0 0
        %469 = vmatpush1.bf16.msra.mxu0 0
        %470 = vmatprep.subr.bf16.mxu0 0
        %471 = vmatpush1.bf16.msra.mxu0 0
        %472 = vmatprep.subr.bf16.mxu0 0
        %473 = vmatpush1.bf16.msra.mxu0 0
        %474 = vmatprep.subr.bf16.mxu0 0
        %475 = vmatpush1.bf16.msra.mxu0 0
        %476 = vmatprep.subr.bf16.mxu0 0
        %477 = vmatpush1.bf16.msra.mxu0 0
        %478 = vmatprep.subr.bf16.mxu0 0
        %479 = vmatpush1.bf16.msra.mxu0 0
        %480 = vmatprep.subr.bf16.mxu0 0
        %481 = vmatpush1.bf16.msra.mxu0 0
        %482 = vmatprep.subr.bf16.mxu0 0
        %483 = vmatpush1.bf16.msra.mxu0 0
        %484 = vmatprep.subr.bf16.mxu0 0
        %485 = vmatpush1.bf16.msra.mxu0 0
        %486 = vmatprep.subr.bf16.mxu0 0
        %487 = vmatpush1.bf16.msra.mxu0 0
        %488 = vmatprep.subr.bf16.mxu0 0
        %489 = vmatpush1.bf16.msra.mxu0 0
        %490 = vmatprep.subr.bf16.mxu0 0
        %491 = vmatpush1.bf16.msra.mxu0 0
        %492 = vmatprep.subr.bf16.mxu0 0
        %493 = vmatpush1.bf16.msra.mxu0 0
        %494 = vmatprep.mubr.bf16.mxu0 0
        %495 = vmatmul.mubr.bf16.gmra.mrb[0].mxu0 %v460
        %v496 = vpop.f32.mrb[0].mxu0
        %v497 = vadd.f32 0.0, %v496
        %v498 = vpop.f32.mrb[0].mxu0
        %v499 = vpop.f32.mrb[0].mxu0
        %v500 = vpop.f32.mrb[0].mxu0
        %501 = vdwg.mxu0
        %v502 = vpack.c.bf16 %v497, %v497
        %v503 = vlaneseq
        %v504 = vshrl.u32 %v503, 7
        %v505 = vlaneseq
        %v506 = vand.u32 %v505, 127
        %vm507 = vcmp.ge.s32.totalorder %v504, %v506
        %509 = vrot.lane.b32.xlu0 %v502, 96
        %v510 = vpop.permute.xlu0 %509
        %vm511 = vcmask 64512
        %v513 = vsel %vm511, %v502, 0
        %v516 = vsel %vm511, %v510, 0
        %518 = vmatprep.subr.bf16.mxu0 0
        %519 = vmatpush1.bf16.xpose.msra.mxu0 %v516
        %520 = vmatprep.subr.bf16.mxu0 0
        %521 = vmatpush1.bf16.xpose.msra.mxu0 0
        %522 = vmatprep.subr.bf16.mxu0 0
        %523 = vmatpush1.bf16.xpose.msra.mxu0 0
        %524 = vmatprep.subr.bf16.mxu0 0
        %525 = vmatpush1.bf16.xpose.msra.mxu0 0
        %526 = vmatprep.subr.bf16.mxu0 0
        %527 = vmatpush1.bf16.xpose.msra.mxu0 0
        %528 = vmatprep.subr.bf16.mxu0 0
        %529 = vmatpush1.bf16.xpose.msra.mxu0 0
        %530 = vmatprep.subr.bf16.mxu0 0
        %531 = vmatpush1.bf16.xpose.msra.mxu0 0
        %532 = vmatprep.subr.bf16.mxu0 0
        %533 = vmatpush1.bf16.xpose.msra.mxu0 0
        %534 = vmatprep.subr.bf16.mxu0 0
        %535 = vmatpush1.bf16.xpose.msra.mxu0 0
        %536 = vmatprep.subr.bf16.mxu0 0
        %537 = vmatpush1.bf16.xpose.msra.mxu0 0
        %538 = vmatprep.subr.bf16.mxu0 0
        %539 = vmatpush1.bf16.xpose.msra.mxu0 0
        %540 = vmatprep.subr.bf16.mxu0 0
        %541 = vmatpush1.bf16.xpose.msra.mxu0 0
        %542 = vmatprep.subr.bf16.mxu0 0
        %543 = vmatpush1.bf16.xpose.msra.mxu0 0
        %544 = vmatprep.subr.bf16.mxu0 0
        %545 = vmatpush1.bf16.xpose.msra.mxu0 0
        %546 = vmatprep.subr.bf16.mxu0 0
        %547 = vmatpush1.bf16.xpose.msra.mxu0 0
        %548 = vmatprep.subr.bf16.mxu0 0
        %549 = vmatpush1.bf16.xpose.msra.mxu0 0
        %550 = vmatprep.mubr.bf16.mxu0 0
        %551 = vmatmul.mubr.bf16.gmra.mrb[0].mxu0 %v513
        %v552 = vpop.f32.mrb[0].mxu0
        %v553 = vadd.f32 0.0, %v552
        %v554 = vpop.f32.mrb[0].mxu0
        %v555 = vpop.f32.mrb[0].mxu0
        %v556 = vpop.f32.mrb[0].mxu0
        %557 = vdwg.mxu0
        %v558 = vsel %vm507, %v553, -inf
        %v559 = vsel %vm511, %v558, -inf
        %560 = vmax.xlane.f32.xlu0 %v559
        %v561 = vpop.xlane.xlu0 %560
        %v562 = vsub.f32 %v558, %v561
        %v563 = vmul.f32 %v562, 1.442695
        %v564 = vpow.pop %v563
        %v565 = vsel %vm511, %v564, 0.0
        %566 = vadd.xlane.f32.xlu0 %v565
        %v567 = vpop.xlane.xlu0 %566
        %v568 = vrcp.pop %v567
        %v569 = vmul.f32 %v564, %v568
        %v570 = vpack.c.bf16 %v569, %v569
        %571 = vrot.lane.b32.xlu0 %v502, 64
        %v572 = vpop.permute.xlu0 %571
        %v574 = vsel %vm511, %v570, 0
        %vm576 = vcmask 1043456
        %v578 = vsel %vm576, %v572, 0
        %580 = vmatprep.subr.bf16.mxu0 0
        %581 = vmatpush1.bf16.msra.mxu0 %v578
        %582 = vmatprep.subr.bf16.mxu0 0
        %583 = vmatpush1.bf16.msra.mxu0 0
        %584 = vmatprep.subr.bf16.mxu0 0
        %585 = vmatpush1.bf16.msra.mxu0 0
        %586 = vmatprep.subr.bf16.mxu0 0
        %587 = vmatpush1.bf16.msra.mxu0 0
        %588 = vmatprep.subr.bf16.mxu0 0
        %589 = vmatpush1.bf16.msra.mxu0 0
        %590 = vmatprep.subr.bf16.mxu0 0
        %591 = vmatpush1.bf16.msra.mxu0 0
        %592 = vmatprep.subr.bf16.mxu0 0
        %593 = vmatpush1.bf16.msra.mxu0 0
        %594 = vmatprep.subr.bf16.mxu0 0
        %595 = vmatpush1.bf16.msra.mxu0 0
        %596 = vmatprep.subr.bf16.mxu0 0
        %597 = vmatpush1.bf16.msra.mxu0 0
        %598 = vmatprep.subr.bf16.mxu0 0
        %599 = vmatpush1.bf16.msra.mxu0 0
        %600 = vmatprep.subr.bf16.mxu0 0
        %601 = vmatpush1.bf16.msra.mxu0 0
        %602 = vmatprep.subr.bf16.mxu0 0
        %603 = vmatpush1.bf16.msra.mxu0 0
        %604 = vmatprep.subr.bf16.mxu0 0
        %605 = vmatpush1.bf16.msra.mxu0 0
        %606 = vmatprep.subr.bf16.mxu0 0
        %607 = vmatpush1.bf16.msra.mxu0 0
        %608 = vmatprep.subr.bf16.mxu0 0
        %609 = vmatpush1.bf16.msra.mxu0 0
        %610 = vmatprep.subr.bf16.mxu0 0
        %611 = vmatpush1.bf16.msra.mxu0 0
        %612 = vmatprep.mubr.bf16.mxu0 0
        %613 = vmatmul.mubr.bf16.gmra.mrb[0].mxu0 %v574
        %v614 = vpop.f32.mrb[0].mxu0
        %v615 = vadd.f32 0.0, %v614
        %v616 = vpop.f32.mrb[0].mxu0
        %v617 = vpop.f32.mrb[0].mxu0
        %v618 = vpop.f32.mrb[0].mxu0
        %619 = vdwg.mxu0
        %620 = vrot.lane.b32.xlu0 %v502, 120
        %v621 = vpop.permute.xlu0 %620
        %622 = vrot.lane.b32.xlu0 %v502, 88
        %v623 = vpop.permute.xlu0 %622
        %v625 = vsel %vm511, %v621, 0
        %v628 = vsel %vm511, %v623, 0
        %630 = vmatprep.subr.bf16.mxu0 0
        %631 = vmatpush1.bf16.xpose.msra.mxu0 %v628
        %632 = vmatprep.subr.bf16.mxu0 0
        %633 = vmatpush1.bf16.xpose.msra.mxu0 0
        %634 = vmatprep.subr.bf16.mxu0 0
        %635 = vmatpush1.bf16.xpose.msra.mxu0 0
        %636 = vmatprep.subr.bf16.mxu0 0
        %637 = vmatpush1.bf16.xpose.msra.mxu0 0
        %638 = vmatprep.subr.bf16.mxu0 0
        %639 = vmatpush1.bf16.xpose.msra.mxu0 0
        %640 = vmatprep.subr.bf16.mxu0 0
        %641 = vmatpush1.bf16.xpose.msra.mxu0 0
        %642 = vmatprep.subr.bf16.mxu0 0
        %643 = vmatpush1.bf16.xpose.msra.mxu0 0
        %644 = vmatprep.subr.bf16.mxu0 0
        %645 = vmatpush1.bf16.xpose.msra.mxu0 0
        %646 = vmatprep.subr.bf16.mxu0 0
        %647 = vmatpush1.bf16.xpose.msra.mxu0 0
        %648 = vmatprep.subr.bf16.mxu0 0
        %649 = vmatpush1.bf16.xpose.msra.mxu0 0
        %650 = vmatprep.subr.bf16.mxu0 0
        %651 = vmatpush1.bf16.xpose.msra.mxu0 0
        %652 = vmatprep.subr.bf16.mxu0 0
        %653 = vmatpush1.bf16.xpose.msra.mxu0 0
        %654 = vmatprep.subr.bf16.mxu0 0
        %655 = vmatpush1.bf16.xpose.msra.mxu0 0
        %656 = vmatprep.subr.bf16.mxu0 0
        %657 = vmatpush1.bf16.xpose.msra.mxu0 0
        %658 = vmatprep.subr.bf16.mxu0 0
        %659 = vmatpush1.bf16.xpose.msra.mxu0 0
        %660 = vmatprep.subr.bf16.mxu0 0
        %661 = vmatpush1.bf16.xpose.msra.mxu0 0
        %662 = vmatprep.mubr.bf16.mxu0 0
        %663 = vmatmul.mubr.bf16.gmra.mrb[0].mxu0 %v625
        %v664 = vpop.f32.mrb[0].mxu0
        %v665 = vadd.f32 0.0, %v664
        %v666 = vpop.f32.mrb[0].mxu0
        %v667 = vpop.f32.mrb[0].mxu0
        %v668 = vpop.f32.mrb[0].mxu0
        %669 = vdwg.mxu0
        %v670 = vsel %vm507, %v665, -inf
        %v671 = vsel %vm511, %v670, -inf
        %672 = vmax.xlane.f32.xlu0 %v671
        %v673 = vpop.xlane.xlu0 %672
        %v674 = vsub.f32 %v670, %v673
        %v675 = vmul.f32 %v674, 1.442695
        %v676 = vpow.pop %v675
        %v677 = vsel %vm511, %v676, 0.0
        %678 = vadd.xlane.f32.xlu0 %v677
        %v679 = vpop.xlane.xlu0 %678
        %v680 = vrcp.pop %v679
        %v681 = vmul.f32 %v676, %v680
        %v682 = vpack.c.bf16 %v681, %v681
        %683 = vrot.lane.b32.xlu0 %v502, 56
        %v684 = vpop.permute.xlu0 %683
        %v686 = vsel %vm511, %v682, 0
        %v689 = vsel %vm576, %v684, 0
        %691 = vmatprep.subr.bf16.mxu0 0
        %692 = vmatpush1.bf16.msra.mxu0 %v689
        %693 = vmatprep.subr.bf16.mxu0 0
        %694 = vmatpush1.bf16.msra.mxu0 0
        %695 = vmatprep.subr.bf16.mxu0 0
        %696 = vmatpush1.bf16.msra.mxu0 0
        %697 = vmatprep.subr.bf16.mxu0 0
        %698 = vmatpush1.bf16.msra.mxu0 0
        %699 = vmatprep.subr.bf16.mxu0 0
        %700 = vmatpush1.bf16.msra.mxu0 0
        %701 = vmatprep.subr.bf16.mxu0 0
        %702 = vmatpush1.bf16.msra.mxu0 0
        %703 = vmatprep.subr.bf16.mxu0 0
        %704 = vmatpush1.bf16.msra.mxu0 0
        %705 = vmatprep.subr.bf16.mxu0 0
        %706 = vmatpush1.bf16.msra.mxu0 0
        %707 = vmatprep.subr.bf16.mxu0 0
        %708 = vmatpush1.bf16.msra.mxu0 0
        %709 = vmatprep.subr.bf16.mxu0 0
        %710 = vmatpush1.bf16.msra.mxu0 0
        %711 = vmatprep.subr.bf16.mxu0 0
        %712 = vmatpush1.bf16.msra.mxu0 0
        %713 = vmatprep.subr.bf16.mxu0 0
        %714 = vmatpush1.bf16.msra.mxu0 0
        %715 = vmatprep.subr.bf16.mxu0 0
        %716 = vmatpush1.bf16.msra.mxu0 0
        %717 = vmatprep.subr.bf16.mxu0 0
        %718 = vmatpush1.bf16.msra.mxu0 0
        %719 = vmatprep.subr.bf16.mxu0 0
        %720 = vmatpush1.bf16.msra.mxu0 0
        %721 = vmatprep.subr.bf16.mxu0 0
        %722 = vmatpush1.bf16.msra.mxu0 0
        %723 = vmatprep.mubr.bf16.mxu0 0
        %724 = vmatmul.mubr.bf16.gmra.mrb[0].mxu0 %v686
        %v725 = vpop.f32.mrb[0].mxu0
        %v726 = vadd.f32 0.0, %v725
        %v727 = vpop.f32.mrb[0].mxu0
        %v728 = vpop.f32.mrb[0].mxu0
        %v729 = vpop.f32.mrb[0].mxu0
        %730 = vdwg.mxu0
        %731 = vrot.lane.b32.xlu0 %v502, 112
        %v732 = vpop.permute.xlu0 %731
        %733 = vrot.lane.b32.xlu0 %v502, 80
        %v734 = vpop.permute.xlu0 %733
        %v736 = vsel %vm511, %v732, 0
        %v739 = vsel %vm511, %v734, 0
        %741 = vmatprep.subr.bf16.mxu0 0
        %742 = vmatpush1.bf16.xpose.msra.mxu0 %v739
        %743 = vmatprep.subr.bf16.mxu0 0
        %744 = vmatpush1.bf16.xpose.msra.mxu0 0
        %745 = vmatprep.subr.bf16.mxu0 0
        %746 = vmatpush1.bf16.xpose.msra.mxu0 0
        %747 = vmatprep.subr.bf16.mxu0 0
        %748 = vmatpush1.bf16.xpose.msra.mxu0 0
        %749 = vmatprep.subr.bf16.mxu0 0
        %750 = vmatpush1.bf16.xpose.msra.mxu0 0
        %751 = vmatprep.subr.bf16.mxu0 0
        %752 = vmatpush1.bf16.xpose.msra.mxu0 0
        %753 = vmatprep.subr.bf16.mxu0 0
        %754 = vmatpush1.bf16.xpose.msra.mxu0 0
        %755 = vmatprep.subr.bf16.mxu0 0
        %756 = vmatpush1.bf16.xpose.msra.mxu0 0
        %757 = vmatprep.subr.bf16.mxu0 0
        %758 = vmatpush1.bf16.xpose.msra.mxu0 0
        %759 = vmatprep.subr.bf16.mxu0 0
        %760 = vmatpush1.bf16.xpose.msra.mxu0 0
        %761 = vmatprep.subr.bf16.mxu0 0
        %762 = vmatpush1.bf16.xpose.msra.mxu0 0
        %763 = vmatprep.subr.bf16.mxu0 0
        %764 = vmatpush1.bf16.xpose.msra.mxu0 0
        %765 = vmatprep.subr.bf16.mxu0 0
        %766 = vmatpush1.bf16.xpose.msra.mxu0 0
        %767 = vmatprep.subr.bf16.mxu0 0
        %768 = vmatpush1.bf16.xpose.msra.mxu0 0
        %769 = vmatprep.subr.bf16.mxu0 0
        %770 = vmatpush1.bf16.xpose.msra.mxu0 0
        %771 = vmatprep.subr.bf16.mxu0 0
        %772 = vmatpush1.bf16.xpose.msra.mxu0 0
        %773 = vmatprep.mubr.bf16.mxu0 0
        %774 = vmatmul.mubr.bf16.gmra.mrb[0].mxu0 %v736
        %v775 = vpop.f32.mrb[0].mxu0
        %v776 = vadd.f32 0.0, %v775
        %v777 = vpop.f32.mrb[0].mxu0
        %v778 = vpop.f32.mrb[0].mxu0
        %v779 = vpop.f32.mrb[0].mxu0
        %780 = vdwg.mxu0
        %v781 = vsel %vm507, %v776, -inf
        %v782 = vsel %vm511, %v781, -inf
        %783 = vmax.xlane.f32.xlu0 %v782
        %v784 = vpop.xlane.xlu0 %783
        %v785 = vsub.f32 %v781, %v784
        %v786 = vmul.f32 %v785, 1.442695
        %v787 = vpow.pop %v786
        %v788 = vsel %vm511, %v787, 0.0
        %789 = vadd.xlane.f32.xlu0 %v788
        %v790 = vpop.xlane.xlu0 %789
        %v791 = vrcp.pop %v790
        %v792 = vmul.f32 %v787, %v791
        %v793 = vpack.c.bf16 %v792, %v792
        %794 = vrot.lane.b32.xlu0 %v502, 48
        %v795 = vpop.permute.xlu0 %794
        %v797 = vsel %vm511, %v793, 0
        %v800 = vsel %vm576, %v795, 0
        %802 = vmatprep.subr.bf16.mxu0 0
        %803 = vmatpush1.bf16.msra.mxu0 %v800
        %804 = vmatprep.subr.bf16.mxu0 0
        %805 = vmatpush1.bf16.msra.mxu0 0
        %806 = vmatprep.subr.bf16.mxu0 0
        %807 = vmatpush1.bf16.msra.mxu0 0
        %808 = vmatprep.subr.bf16.mxu0 0
        %809 = vmatpush1.bf16.msra.mxu0 0
        %810 = vmatprep.subr.bf16.mxu0 0
        %811 = vmatpush1.bf16.msra.mxu0 0
        %812 = vmatprep.subr.bf16.mxu0 0
        %813 = vmatpush1.bf16.msra.mxu0 0
        %814 = vmatprep.subr.bf16.mxu0 0
        %815 = vmatpush1.bf16.msra.mxu0 0
        %816 = vmatprep.subr.bf16.mxu0 0
        %817 = vmatpush1.bf16.msra.mxu0 0
        %818 = vmatprep.subr.bf16.mxu0 0
        %819 = vmatpush1.bf16.msra.mxu0 0
        %820 = vmatprep.subr.bf16.mxu0 0
        %821 = vmatpush1.bf16.msra.mxu0 0
        %822 = vmatprep.subr.bf16.mxu0 0
        %823 = vmatpush1.bf16.msra.mxu0 0
        %824 = vmatprep.subr.bf16.mxu0 0
        %825 = vmatpush1.bf16.msra.mxu0 0
        %826 = vmatprep.subr.bf16.mxu0 0
        %827 = vmatpush1.bf16.msra.mxu0 0
        %828 = vmatprep.subr.bf16.mxu0 0
        %829 = vmatpush1.bf16.msra.mxu0 0
        %830 = vmatprep.subr.bf16.mxu0 0
        %831 = vmatpush1.bf16.msra.mxu0 0
        %832 = vmatprep.subr.bf16.mxu0 0
        %833 = vmatpush1.bf16.msra.mxu0 0
        %834 = vmatprep.mubr.bf16.mxu0 0
        %835 = vmatmul.mubr.bf16.gmra.mrb[0].mxu0 %v797
        %v836 = vpop.f32.mrb[0].mxu0
        %v837 = vadd.f32 0.0, %v836
        %v838 = vpop.f32.mrb[0].mxu0
        %v839 = vpop.f32.mrb[0].mxu0
        %v840 = vpop.f32.mrb[0].mxu0
        %841 = vdwg.mxu0
        %842 = vrot.lane.b32.xlu0 %v502, 104
        %v843 = vpop.permute.xlu0 %842
        %844 = vrot.lane.b32.xlu0 %v502, 72
        %v845 = vpop.permute.xlu0 %844
        %v847 = vsel %vm511, %v843, 0
        %v850 = vsel %vm511, %v845, 0
        %852 = vmatprep.subr.bf16.mxu0 0
        %853 = vmatpush1.bf16.xpose.msra.mxu0 %v850
        %854 = vmatprep.subr.bf16.mxu0 0
        %855 = vmatpush1.bf16.xpose.msra.mxu0 0
        %856 = vmatprep.subr.bf16.mxu0 0
        %857 = vmatpush1.bf16.xpose.msra.mxu0 0
        %858 = vmatprep.subr.bf16.mxu0 0
        %859 = vmatpush1.bf16.xpose.msra.mxu0 0
        %860 = vmatprep.subr.bf16.mxu0 0
        %861 = vmatpush1.bf16.xpose.msra.mxu0 0
        %862 = vmatprep.subr.bf16.mxu0 0
        %863 = vmatpush1.bf16.xpose.msra.mxu0 0
        %864 = vmatprep.subr.bf16.mxu0 0
        %865 = vmatpush1.bf16.xpose.msra.mxu0 0
        %866 = vmatprep.subr.bf16.mxu0 0
        %867 = vmatpush1.bf16.xpose.msra.mxu0 0
        %868 = vmatprep.subr.bf16.mxu0 0
        %869 = vmatpush1.bf16.xpose.msra.mxu0 0
        %870 = vmatprep.subr.bf16.mxu0 0
        %871 = vmatpush1.bf16.xpose.msra.mxu0 0
        %872 = vmatprep.subr.bf16.mxu0 0
        %873 = vmatpush1.bf16.xpose.msra.mxu0 0
        %874 = vmatprep.subr.bf16.mxu0 0
        %875 = vmatpush1.bf16.xpose.msra.mxu0 0
        %876 = vmatprep.subr.bf16.mxu0 0
        %877 = vmatpush1.bf16.xpose.msra.mxu0 0
        %878 = vmatprep.subr.bf16.mxu0 0
        %879 = vmatpush1.bf16.xpose.msra.mxu0 0
        %880 = vmatprep.subr.bf16.mxu0 0
        %881 = vmatpush1.bf16.xpose.msra.mxu0 0
        %882 = vmatprep.subr.bf16.mxu0 0
        %883 = vmatpush1.bf16.xpose.msra.mxu0 0
        %884 = vmatprep.mubr.bf16.mxu0 0
        %885 = vmatmul.mubr.bf16.gmra.mrb[0].mxu0 %v847
        %v886 = vpop.f32.mrb[0].mxu0
        %v887 = vadd.f32 0.0, %v886
        %v888 = vpop.f32.mrb[0].mxu0
        %v889 = vpop.f32.mrb[0].mxu0
        %v890 = vpop.f32.mrb[0].mxu0
        %891 = vdwg.mxu0
        %v892 = vsel %vm507, %v887, -inf
        %v893 = vsel %vm511, %v892, -inf
        %894 = vmax.xlane.f32.xlu0 %v893
        %v895 = vpop.xlane.xlu0 %894
        %v896 = vsub.f32 %v892, %v895
        %v897 = vmul.f32 %v896, 1.442695
        %v898 = vpow.pop %v897
        %v899 = vsel %vm511, %v898, 0.0
        %900 = vadd.xlane.f32.xlu0 %v899
        %v901 = vpop.xlane.xlu0 %900
        %v902 = vrcp.pop %v901
        %v903 = vmul.f32 %v898, %v902
        %v904 = vpack.c.bf16 %v903, %v903
        %905 = vrot.lane.b32.xlu0 %v502, 40
        %v906 = vpop.permute.xlu0 %905
        %v908 = vsel %vm511, %v904, 0
        %v911 = vsel %vm576, %v906, 0
        %913 = vmatprep.subr.bf16.mxu0 0
        %914 = vmatpush1.bf16.msra.mxu0 %v911
        %915 = vmatprep.subr.bf16.mxu0 0
        %916 = vmatpush1.bf16.msra.mxu0 0
        %917 = vmatprep.subr.bf16.mxu0 0
        %918 = vmatpush1.bf16.msra.mxu0 0
        %919 = vmatprep.subr.bf16.mxu0 0
        %920 = vmatpush1.bf16.msra.mxu0 0
        %921 = vmatprep.subr.bf16.mxu0 0
        %922 = vmatpush1.bf16.msra.mxu0 0
        %923 = vmatprep.subr.bf16.mxu0 0
        %924 = vmatpush1.bf16.msra.mxu0 0
        %925 = vmatprep.subr.bf16.mxu0 0
        %926 = vmatpush1.bf16.msra.mxu0 0
        %927 = vmatprep.subr.bf16.mxu0 0
        %928 = vmatpush1.bf16.msra.mxu0 0
        %929 = vmatprep.subr.bf16.mxu0 0
        %930 = vmatpush1.bf16.msra.mxu0 0
        %931 = vmatprep.subr.bf16.mxu0 0
        %932 = vmatpush1.bf16.msra.mxu0 0
        %933 = vmatprep.subr.bf16.mxu0 0
        %934 = vmatpush1.bf16.msra.mxu0 0
        %935 = vmatprep.subr.bf16.mxu0 0
        %936 = vmatpush1.bf16.msra.mxu0 0
        %937 = vmatprep.subr.bf16.mxu0 0
        %938 = vmatpush1.bf16.msra.mxu0 0
        %939 = vmatprep.subr.bf16.mxu0 0
        %940 = vmatpush1.bf16.msra.mxu0 0
        %941 = vmatprep.subr.bf16.mxu0 0
        %942 = vmatpush1.bf16.msra.mxu0 0
        %943 = vmatprep.subr.bf16.mxu0 0
        %944 = vmatpush1.bf16.msra.mxu0 0
        %945 = vmatprep.mubr.bf16.mxu0 0
        %946 = vmatmul.mubr.bf16.gmra.mrb[0].mxu0 %v908
        %v947 = vpop.f32.mrb[0].mxu0
        %v948 = vadd.f32 0.0, %v947
        %v949 = vpop.f32.mrb[0].mxu0
        %v950 = vpop.f32.mrb[0].mxu0
        %v951 = vpop.f32.mrb[0].mxu0
        %952 = vdwg.mxu0
        %954 = vrot.lane.b32.xlu0 %v726, 8
        %v955 = vpop.permute.xlu0 %954
        %958 = vrot.lane.b32.xlu0 %v837, 16
        %v959 = vpop.permute.xlu0 %958
        %962 = vrot.lane.b32.xlu0 %v948, 24
        %v963 = vpop.permute.xlu0 %962
        %v965 = vsel %vm511, %v615, %v955
        %vm966 = vcmask 130048
        %v967 = vsel %vm966, %v965, %v959
        %vm968 = vcmask 195584
        %v969 = vsel %vm968, %v967, %v963
        %v970 = vpack.c.bf16 %v969, %v969
        %v971 = vld [vmem:[%s4] sm:$0xf]
        %v972 = vld [vmem:[%s4 + $0x4] sm:$0xf]
        %v973 = vld [vmem:[%s4 + $0x8] sm:$0xf]
        %v974 = vld [vmem:[%s4 + $0xc] sm:$0xf]
        %v975 = vld [vmem:[%s5] sm:$0x1]
        %v977 = vlaneseq
        %v978 = vshrl.u32 %v977, 7
        %v979 = vsub.s32 0, %v978
        %v980 = vrot.slane %v975, %v979
        %v986 = vunpack.c.l.b16 %v971
        %v987 = vunpack.c.l.b16 %v972
        %v988 = vunpack.c.l.b16 %v973
        %v989 = vunpack.c.l.b16 %v974
        %v990 = vpack.c.b16 %v987, %v986
        %v991 = vpack.c.b16 %v989, %v988
        %v995 = vsel %vm411, %v970, 0
        %997 = vmatprep.subr.bf16.mxu0 0
        %998 = vmatpush1.bf16.msra.mxu0 %v990
        %999 = vmatprep.subr.bf16.mxu0 0
        %1000 = vmatpush1.bf16.msra.mxu0 %v991
        %1001 = vmatprep.subr.bf16.mxu0 0
        %1002 = vmatpush1.bf16.msra.mxu0 0
        %1003 = vmatprep.subr.bf16.mxu0 0
        %1004 = vmatpush1.bf16.msra.mxu0 0
        %1005 = vmatprep.subr.bf16.mxu0 0
        %1006 = vmatpush1.bf16.msra.mxu0 0
        %1007 = vmatprep.subr.bf16.mxu0 0
        %1008 = vmatpush1.bf16.msra.mxu0 0
        %1009 = vmatprep.subr.bf16.mxu0 0
        %1010 = vmatpush1.bf16.msra.mxu0 0
        %1011 = vmatprep.subr.bf16.mxu0 0
        %1012 = vmatpush1.bf16.msra.mxu0 0
        %1013 = vmatprep.subr.bf16.mxu0 0
        %1014 = vmatpush1.bf16.msra.mxu0 0
        %1015 = vmatprep.subr.bf16.mxu0 0
        %1016 = vmatpush1.bf16.msra.mxu0 0
        %1017 = vmatprep.subr.bf16.mxu0 0
        %1018 = vmatpush1.bf16.msra.mxu0 0
        %1019 = vmatprep.subr.bf16.mxu0 0
        %1020 = vmatpush1.bf16.msra.mxu0 0
        %1021 = vmatprep.subr.bf16.mxu0 0
        %1022 = vmatpush1.bf16.msra.mxu0 0
        %1023 = vmatprep.subr.bf16.mxu0 0
        %1024 = vmatpush1.bf16.msra.mxu0 0
        %1025 = vmatprep.subr.bf16.mxu0 0
        %1026 = vmatpush1.bf16.msra.mxu0 0
        %1027 = vmatprep.subr.bf16.mxu0 0
        %1028 = vmatpush1.bf16.msra.mxu0 0
        %1029 = vmatprep.mubr.bf16.mxu0 0
        %1030 = vmatmul.mubr.bf16.gmra.mrb[0].mxu0 %v995
        %v1031 = vpop.f32.mrb[0].mxu0
        %v1032 = vadd.f32 %v980, %v1031
        %v1033 = vpop.f32.mrb[0].mxu0
        %v1034 = vpop.f32.mrb[0].mxu0
        %v1035 = vpop.f32.mrb[0].mxu0
        %1036 = vdwg.mxu0
        %v1037 = vadd.f32 %v410, %v1032
        %v1038 = vsel %vm411, %v1037, 0.0
        %1039 = vadd.xlane.f32.xlu0 %v1038
        %v1040 = vpop.xlane.xlu0 %1039
        %v1041 = vmul.f32 %v1040, %v415
        %v1042 = vsub.f32 %v1037, %v1041
        %v1043 = vmul.f32 %v1042, %v1042
        %v1044 = vsel %vm411, %v1043, 0.0
        %1045 = vadd.xlane.f32.xlu0 %v1044
        %v1046 = vpop.xlane.xlu0 %1045
        %v1047 = vmul.f32 %v1046, %v415
        %v1048 = vadd.f32 %v1047, 1e-05
        %v1049 = vrsqrt.pop %v1048
        %v1050 = vmul.f32 %v1042, %v1049
        %v1051 = vld [vmem:[%s6] sm:$0x1]
        %v1053 = vlaneseq
        %v1054 = vshrl.u32 %v1053, 7
        %v1055 = vsub.s32 0, %v1054
        %v1056 = vrot.slane %v1051, %v1055
        %v1058 = vmul.f32 %v1050, %v1056
        %v1059 = vld [vmem:[%s7] sm:$0x1]
        %v1061 = vlaneseq
        %v1062 = vshrl.u32 %v1061, 7
        %v1063 = vsub.s32 0, %v1062
        %v1064 = vrot.slane %v1059, %v1063
        %v1066 = vadd.f32 %v1058, %v1064
        %v1067 = vpack.c.bf16 %v1066, %v1066
        %v1068 = vld [vmem:[%s8] sm:$0xf]
        %v1069 = vld [vmem:[%s8 + $0x4] sm:$0xf]
        %v1070 = vld [vmem:[%s8 + $0x8] sm:$0xf]
        %v1071 = vld [vmem:[%s8 + $0xc] sm:$0xf]
        %v1072 = vld [vmem:[%s9] sm:$0x1]
        %v1074 = vlaneseq
        %v1075 = vshrl.u32 %v1074, 7
        %v1076 = vsub.s32 0, %v1075
        %v1077 = vrot.slane %v1072, %v1076
        %v1083 = vunpack.c.l.b16 %v1068
        %v1084 = vunpack.c.l.b16 %v1069
        %v1085 = vunpack.c.l.b16 %v1070
        %v1086 = vunpack.c.l.b16 %v1071
        %v1087 = vpack.c.b16 %v1084, %v1083
        %v1088 = vpack.c.b16 %v1086, %v1085
        %v1092 = vsel %vm411, %v1067, 0
        %1094 = vmatprep.subr.bf16.mxu0 0
        %1095 = vmatpush1.bf16.msra.mxu0 %v1087
        %1096 = vmatprep.subr.bf16.mxu0 0
        %1097 = vmatpush1.bf16.msra.mxu0 %v1088
        %1098 = vmatprep.subr.bf16.mxu0 0
        %1099 = vmatpush1.bf16.msra.mxu0 0
        %1100 = vmatprep.subr.bf16.mxu0 0
        %1101 = vmatpush1.bf16.msra.mxu0 0
        %1102 = vmatprep.subr.bf16.mxu0 0
        %1103 = vmatpush1.bf16.msra.mxu0 0
        %1104 = vmatprep.subr.bf16.mxu0 0
        %1105 = vmatpush1.bf16.msra.mxu0 0
        %1106 = vmatprep.subr.bf16.mxu0 0
        %1107 = vmatpush1.bf16.msra.mxu0 0
        %1108 = vmatprep.subr.bf16.mxu0 0
        %1109 = vmatpush1.bf16.msra.mxu0 0
        %1110 = vmatprep.subr.bf16.mxu0 0
        %1111 = vmatpush1.bf16.msra.mxu0 0
        %1112 = vmatprep.subr.bf16.mxu0 0
        %1113 = vmatpush1.bf16.msra.mxu0 0
        %1114 = vmatprep.subr.bf16.mxu0 0
        %1115 = vmatpush1.bf16.msra.mxu0 0
        %1116 = vmatprep.subr.bf16.mxu0 0
        %1117 = vmatpush1.bf16.msra.mxu0 0
        %1118 = vmatprep.subr.bf16.mxu0 0
        %1119 = vmatpush1.bf16.msra.mxu0 0
        %1120 = vmatprep.subr.bf16.mxu0 0
        %1121 = vmatpush1.bf16.msra.mxu0 0
        %1122 = vmatprep.subr.bf16.mxu0 0
        %1123 = vmatpush1.bf16.msra.mxu0 0
        %1124 = vmatprep.subr.bf16.mxu0 0
        %1125 = vmatpush1.bf16.msra.mxu0 0
        %1126 = vmatprep.mubr.bf16.mxu0 0
        %1127 = vmatmul.mubr.bf16.gmra.mrb[0].mxu0 %v1092
        %v1128 = vpop.f32.mrb[0].mxu0
        %v1129 = vadd.f32 %v1077, %v1128
        %v1130 = vpop.f32.mrb[0].mxu0
        %v1131 = vpop.f32.mrb[0].mxu0
        %v1132 = vpop.f32.mrb[0].mxu0
        %1133 = vdwg.mxu0
        %v1134 = vmax.f32 %v1129, 0.0
        %v1135 = vpack.c.bf16 %v1134, %v1134
        %v1136 = vld [vmem:[%s10] sm:$0xf]
        %v1137 = vld [vmem:[%s10 + $0x4] sm:$0xf]
        %v1138 = vld [vmem:[%s10 + $0x8] sm:$0xf]
        %v1139 = vld [vmem:[%s10 + $0xc] sm:$0xf]
        %v1140 = vld [vmem:[%s10 + $0x10] sm:$0xf]
        %v1141 = vld [vmem:[%s10 + $0x14] sm:$0xf]
        %v1142 = vld [vmem:[%s10 + $0x18] sm:$0xf]
        %v1143 = vld [vmem:[%s10 + $0x1c] sm:$0xf]
        %v1144 = vld [vmem:[%s10 + $0x20] sm:$0xf]
        %v1145 = vld [vmem:[%s10 + $0x24] sm:$0xf]
        %v1146 = vld [vmem:[%s10 + $0x28] sm:$0xf]
        %v1147 = vld [vmem:[%s10 + $0x2c] sm:$0xf]
        %v1148 = vld [vmem:[%s10 + $0x30] sm:$0xf]
        %v1149 = vld [vmem:[%s10 + $0x34] sm:$0xf]
        %v1150 = vld [vmem:[%s10 + $0x38] sm:$0xf]
        %v1151 = vld [vmem:[%s10 + $0x3c] sm:$0xf]
        %v1152 = vld [vmem:[%s11] sm:$0x1]
        %v1154 = vlaneseq
        %v1155 = vshrl.u32 %v1154, 7
        %v1156 = vsub.s32 0, %v1155
        %v1157 = vrot.slane %v1152, %v1156
        %v1175 = vunpack.c.l.b16 %v1136
        %v1176 = vunpack.c.l.b16 %v1137
        %v1177 = vunpack.c.l.b16 %v1138
        %v1178 = vunpack.c.l.b16 %v1139
        %v1179 = vunpack.c.l.b16 %v1140
        %v1180 = vunpack.c.l.b16 %v1141
        %v1181 = vunpack.c.l.b16 %v1142
        %v1182 = vunpack.c.l.b16 %v1143
        %v1183 = vunpack.c.l.b16 %v1144
        %v1184 = vunpack.c.l.b16 %v1145
        %v1185 = vunpack.c.l.b16 %v1146
        %v1186 = vunpack.c.l.b16 %v1147
        %v1187 = vunpack.c.l.b16 %v1148
        %v1188 = vunpack.c.l.b16 %v1149
        %v1189 = vunpack.c.l.b16 %v1150
        %v1190 = vunpack.c.l.b16 %v1151
        %v1191 = vpack.c.b16 %v1176, %v1175
        %v1192 = vpack.c.b16 %v1178, %v1177
        %v1193 = vpack.c.b16 %v1180, %v1179
        %v1194 = vpack.c.b16 %v1182, %v1181
        %v1195 = vpack.c.b16 %v1184, %v1183
        %v1196 = vpack.c.b16 %v1186, %v1185
        %v1197 = vpack.c.b16 %v1188, %v1187
        %v1198 = vpack.c.b16 %v1190, %v1189
        %1207 = vmatprep.subr.bf16.mxu0 0
        %1208 = vmatpush1.bf16.msra.mxu0 %v1191
        %1209 = vmatprep.subr.bf16.mxu0 0
        %1210 = vmatpush1.bf16.msra.mxu0 %v1192
        %1211 = vmatprep.subr.bf16.mxu0 0
        %1212 = vmatpush1.bf16.msra.mxu0 %v1193
        %1213 = vmatprep.subr.bf16.mxu0 0
        %1214 = vmatpush1.bf16.msra.mxu0 %v1194
        %1215 = vmatprep.subr.bf16.mxu0 0
        %1216 = vmatpush1.bf16.msra.mxu0 %v1195
        %1217 = vmatprep.subr.bf16.mxu0 0
        %1218 = vmatpush1.bf16.msra.mxu0 %v1196
        %1219 = vmatprep.subr.bf16.mxu0 0
        %1220 = vmatpush1.bf16.msra.mxu0 %v1197
        %1221 = vmatprep.subr.bf16.mxu0 0
        %1222 = vmatpush1.bf16.msra.mxu0 %v1198
        %1223 = vmatprep.subr.bf16.mxu0 0
        %1224 = vmatpush1.bf16.msra.mxu0 0
        %1225 = vmatprep.subr.bf16.mxu0 0
        %1226 = vmatpush1.bf16.msra.mxu0 0
        %1227 = vmatprep.subr.bf16.mxu0 0
        %1228 = vmatpush1.bf16.msra.mxu0 0
        %1229 = vmatprep.subr.bf16.mxu0 0
        %1230 = vmatpush1.bf16.msra.mxu0 0
        %1231 = vmatprep.subr.bf16.mxu0 0
        %1232 = vmatpush1.bf16.msra.mxu0 0
        %1233 = vmatprep.subr.bf16.mxu0 0
        %1234 = vmatpush1.bf16.msra.mxu0 0
        %1235 = vmatprep.subr.bf16.mxu0 0
        %1236 = vmatpush1.bf16.msra.mxu0 0
        %1237 = vmatprep.subr.bf16.mxu0 0
        %1238 = vmatpush1.bf16.msra.mxu0 0
        %1239 = vmatprep.mubr.bf16.mxu0 0
        %1240 = vmatmul.mubr.bf16.gmra.mrb[0].mxu0 %v1135
        %v1241 = vpop.f32.mrb[0].mxu0
        %v1242 = vadd.f32 %v1157, %v1241
        %v1243 = vpop.f32.mrb[0].mxu0
        %v1244 = vpop.f32.mrb[0].mxu0
        %v1245 = vpop.f32.mrb[0].mxu0
        %1246 = vdwg.mxu0
        %v1247 = vadd.f32 %v1037, %v1242
        %1248 = vst.msk [vmem:[%s404] sm:$0xff] %vm411, %v1247
        %s1249 = sand.u32 %s291, 1
        %s1250 = scalar_lea.sflag [#allocation3], %s1249
        %s1251 = sand.u32 %s291, 1
        %s1252 = smul.addr %s1251, 8
        %s1253 = scalar_lea.vmem [#allocation2], %s1252
        // Predicated region
        $region69: #{tpu_custom_call.1} parent=67 // pred_check
          %p1254 = pneg %p301
        $region70: #{tpu_custom_call.1} parent=67 // pred_check_branch
          %1256 = sbr.rel (%p1254) target = $region72
        $region71: #{tpu_custom_call.1} parent=67 // pred_region
          %s1258 = ssub.s32 128, 128
          %1259 = vsyncadd %s1250, %s1258
          %s1260 = smul.addr %s26, 128
          %s1261 = scalar_lea.hbm %s12, %s1260
          %s1263 = sshll.u32 %s1253, 4
          %s1264 = int_to_ptr.vmem [resolvable:$true] %s1263
          %1266 = dma.vmem_to_hbm [thread:$0]  %s1264, 128, %s1261, %s1250
        $region72: #{tpu_custom_call.1} parent=67 // pred_fallthru
          _
      $region68: #{tpu_custom_call.1} parent=5 // pred_fallthru
        _
      %p1267 = scmp.le.s32.totalorder 2, %s21
      // Predicated region
      $region73: #{tpu_custom_call.1} parent=5 // pred_check
        %p1268 = pneg %p1267
      $region74: #{tpu_custom_call.1} parent=5 // pred_check_branch
        %1270 = sbr.rel (%p1268) target = $region76
      $region75: #{tpu_custom_call.1} parent=5 // pred_region
        %s1271 = ssub.s32 %s21, 2
        // Predicated region
        $region77: #{tpu_custom_call.1} parent=75 // pred_check
          %p1272 = pneg %p307
        $region78: #{tpu_custom_call.1} parent=75 // pred_check_branch
          %1274 = sbr.rel (%p1272) target = $region80
        $region79: #{tpu_custom_call.1} parent=75 // pred_region
          %s1275 = sand.u32 %s292, 1
          %s1276 = scalar_lea.sflag [#allocation3], %s1275
          %s1277 = sand.u32 %s292, 1
          %s1278 = smul.addr %s1277, 8
          %s1279 = scalar_lea.vmem [#allocation2], %s1278
          %1280 = dma.done %s1276, 128
        $region80: #{tpu_custom_call.1} parent=75 // pred_fallthru
          _
      $region76: #{tpu_custom_call.1} parent=5 // pred_fallthru
        _
    $region6: #{tpu_custom_call.1} parent=1 // loop_footer
      %s25 = sadd.s32 1, %s21
    $region7: #{tpu_custom_call.1} parent=1 // loop_footer_branch
      %20 = sbr.rel target = $region3
    $region8: #{tpu_custom_call.1} parent=1 // loop_exit
      _
    %1281 = vsyncpa [#allocation3], 1
    %s1282 = scalar_lea.sflag [#allocation3], 1
    %1283 = vsyncpa %s1282, 1

</llo_original>
